<compile_context>
chip_gen: v7x
topology: tpu7x:2x2x1
jax: 0.10.0
libtpu: 0.0.40
codegen_flags: <defaults>
</compile_context>

<pallas_src>
import math
from functools import partial

import jax
import jax.numpy as jnp
from jax.experimental import pallas as pl
from jax.experimental.pallas import tpu as pltpu


def _layernorm(x, gamma, beta, eps=1e-5):
    mean = jnp.mean(x, axis=-1, keepdims=True)
    var = jnp.mean((x - mean) ** 2, axis=-1, keepdims=True)
    return (x - mean) * jax.lax.rsqrt(var + eps) * gamma + beta


def myblock_kernel(num_heads, query_dim, value_dim, batch, seq, d_model, hidden,
                   x_ref, w_ref, vec_ref, o_ref):
    H, Qd, Vd = num_heads, query_dim, value_dim
    HQ, HV = H * Qd, H * Vd
    D = d_model
    bt = batch * seq

    x = x_ref[...]                                    # (bt, D) f32
    xb = x.astype(jnp.bfloat16)

    # ---- vector slab: all biases / LayerNorm params (f32, one DMA) -------------------
    vec = vec_ref[...]                                # (8, 192) f32
    bqkv = vec[0:1, :2 * HQ + HV]
    bo = vec[1:2, :D]
    g1 = vec[2:3, :D]
    be1 = vec[3:4, :D]
    b1 = vec[4:5, :hidden]
    b2 = vec[5:6, :D]
    g2 = vec[6:7, :D]
    be2 = vec[7:8, :D]

    # ---- fused QKV projection: one (bt,D) x (D, 2HQ+HV) bf16 matmul, f32 acc ---------
    # (1/sqrt(Qd) already folded into the wq / bq portion on the host.)
    wqkv = w_ref[0:D, 0:2 * HQ + HV]                  # (D, 192) bf16
    qkv = jnp.dot(xb, wqkv, preferred_element_type=jnp.float32) + bqkv   # (bt, 192) f32

    # ---- head-batched attention: stack heads into a single batch axis ----------------
    def head_stack(base, dim):
        parts = [qkv[:, base + h * dim: base + (h + 1) * dim].reshape(batch, seq, dim)
                 for h in range(H)]
        return jnp.concatenate(parts, axis=0).astype(jnp.bfloat16)   # (H*batch, T, dim)

    qs = head_stack(0, Qd)
    ks = head_stack(HQ, Qd)
    vs = head_stack(2 * HQ, Vd)

    s = jnp.einsum('gtd,gsd->gts', qs, ks,
                   preferred_element_type=jnp.float32)               # (H*B, T, T) f32
    s = s - jnp.max(s, axis=-1, keepdims=True)
    p = jnp.exp(s)
    p = p * pl.reciprocal(jnp.sum(p, axis=-1, keepdims=True), approx=True)

    ctx = jnp.einsum('gts,gsd->gtd', p.astype(jnp.bfloat16), vs,
                     preferred_element_type=jnp.float32)             # (H*B, T, Vd) f32

    # Re-concatenate heads on the lane axis -> one output-projection matmul.
    ctx_cat = jnp.concatenate(
        [ctx[h * batch:(h + 1) * batch].reshape(bt, Vd) for h in range(H)], axis=1)

    wo = w_ref[D:D + HV, 0:D]                                        # (HV, D) bf16
    attn = jnp.dot(ctx_cat.astype(jnp.bfloat16), wo,
                   preferred_element_type=jnp.float32) + bo

    y = _layernorm(attn + x, g1, be1)                                # (bt, D) f32

    # ---- FFN --------------------------------------------------------------------------
    w1 = w_ref[D + HV:D + HV + D, 0:hidden]                          # (D, hidden) bf16
    w2 = w_ref[D + HV + D:D + HV + D + hidden, 0:D]                  # (hidden, D) bf16
    hdn = jnp.maximum(
        jnp.dot(y.astype(jnp.bfloat16), w1,
                preferred_element_type=jnp.float32) + b1, 0.0)
    f = jnp.dot(hdn.astype(jnp.bfloat16), w2,
                preferred_element_type=jnp.float32) + b2
    o_ref[...] = _layernorm(y + f, g2, be2)


def myblock_forward(x, params, num_heads, query_dim, value_dim):
    B, T, N, F = x.shape
    D = N * F
    BT = B * T
    HQ = num_heads * query_dim
    HV = num_heads * value_dim
    hidden = params['w1'].shape[1]
    x2 = x.reshape(BT, D).astype(jnp.float32)

    # ---- host-side parameter prep: fold score scale, build the two operand slabs -----
    scale = 1.0 / math.sqrt(query_dim)
    wqkv = jnp.concatenate([params['wq'] * scale, params['wk'], params['wv']], axis=1)
    bqkv = jnp.concatenate([params['bq'] * scale, params['bk'], params['bv']], axis=1)

    lanes = max(2 * HQ + HV, D, hidden)              # 192 for this config

    def padw(w):
        return jnp.pad(w, ((0, 0), (0, lanes - w.shape[1])))

    # bf16 weight slab: rows [0,D)=wqkv, [D,D+HV)=wo, [D+HV,D+HV+D)=w1, then w2.
    wslab = jnp.concatenate(
        [padw(wqkv), padw(params['wo']), padw(params['w1']), padw(params['w2'])],
        axis=0).astype(jnp.bfloat16)

    # f32 vector slab: one row each for bqkv, bo, g1, be1, b1, b2, g2, be2.
    vslab = jnp.concatenate(
        [padw(bqkv), padw(params['bo']), padw(params['g1']), padw(params['be1']),
         padw(params['b1']), padw(params['b2']), padw(params['g2']), padw(params['be2'])],
        axis=0).astype(jnp.float32)                  # (8, 192)

    # v7x has 2 TensorCores: shard the (independent) batch over a parallel grid axis.
    # On single-TC chips (v5e/v6e) keep the whole problem in one grid step.
    try:
        kind = jax.devices()[0].device_kind.lower()
    except Exception:  # pragma: no cover
        kind = ""
    n_steps = 2 if ("v7" in kind and B % 2 == 0) else 1
    bstep = B // n_steps

    flops = (2 * BT * D * (2 * HQ + HV)                       # fused QKV
             + 2 * num_heads * B * T * T * (query_dim + value_dim)  # scores + context
             + 2 * BT * HV * D                                # output projection
             + 2 * BT * D * hidden + 2 * BT * hidden * D)     # FFN
    cost = pl.CostEstimate(
        flops=flops,
        transcendentals=num_heads * B * T * T + 2 * BT,
        bytes_accessed=x2.size * 4 + wslab.size * 2 + vslab.size * 4 + BT * D * 4)

    out = pl.pallas_call(
        partial(myblock_kernel, num_heads, query_dim, value_dim, bstep, T, D, hidden),
        grid=(n_steps,),
        in_specs=[pl.BlockSpec((bstep * T, D), lambda i: (i, 0)),
                  pl.BlockSpec(wslab.shape, lambda i: (0, 0)),
                  pl.BlockSpec(vslab.shape, lambda i: (0, 0))],
        out_specs=pl.BlockSpec((bstep * T, D), lambda i: (i, 0)),
        out_shape=jax.ShapeDtypeStruct((BT, D), jnp.float32),
        compiler_params=pltpu.CompilerParams(dimension_semantics=("parallel",)),
        cost_estimate=cost,
    )(x2, wslab, vslab)
    return out.reshape(B, T, N, -1)


def init_params(key, D, num_heads, query_dim, value_dim, ffn_hidden, ffn_out):
    HQ = num_heads * query_dim
    HV = num_heads * value_dim

    def linear(k, din, dout):
        kw, kb = jax.random.split(k)
        w = jax.random.normal(kw, (din, dout), jnp.float32) * (1.0 / math.sqrt(din))
        b = jax.random.normal(kb, (1, dout), jnp.float32) * 0.01
        return w, b

    keys = jax.random.split(key, 8)
    wq, bq = linear(keys[0], D, HQ)
    wk, bk = linear(keys[1], D, HQ)
    wv, bv = linear(keys[2], D, HV)
    wo, bo = linear(keys[3], HV, D)
    w1, b1 = linear(keys[4], D, ffn_hidden)
    w2, b2 = linear(keys[5], ffn_hidden, ffn_out)
    g1 = jnp.ones((1, D), jnp.float32)
    be1 = jnp.zeros((1, D), jnp.float32)
    g2 = jnp.ones((1, ffn_out), jnp.float32)
    be2 = jnp.zeros((1, ffn_out), jnp.float32)
    return dict(wq=wq, bq=bq, wk=wk, bk=bk, wv=wv, bv=bv, wo=wo, bo=bo,
                g1=g1, be1=be1, w1=w1, b1=b1, w2=w2, b2=b2, g2=g2, be2=be2)


def reference(x, params, num_heads, query_dim, value_dim):
    """Pure-JAX f32 reference mirroring the PyTorch forward (eval mode)."""
    B, T, N, F = x.shape
    D = N * F
    xx = x.reshape(B, T, D)
    q = xx @ params['wq'] + params['bq'][0]
    k = xx @ params['wk'] + params['bk'][0]
    v = xx @ params['wv'] + params['bv'][0]

    def split(a, d):
        return a.reshape(B, T, num_heads, d).transpose(0, 2, 1, 3)

    qh, kh, vh = split(q, query_dim), split(k, query_dim), split(v, value_dim)
    s = jnp.einsum('bhtd,bhsd->bhts', qh, kh) / math.sqrt(query_dim)
    p = jax.nn.softmax(s, axis=-1)
    ctx = jnp.einsum('bhts,bhsd->bhtd', p, vh).transpose(0, 2, 1, 3).reshape(B, T, -1)
    attn = ctx @ params['wo'] + params['bo'][0]

    def ln(z, g, b):
        m = z.mean(-1, keepdims=True)
        vv = ((z - m) ** 2).mean(-1, keepdims=True)
        return (z - m) / jnp.sqrt(vv + 1e-5) * g[0] + b[0]

    y = ln(attn + xx, params['g1'], params['be1'])
    h = jax.nn.relu(y @ params['w1'] + params['b1'][0])
    f = h @ params['w2'] + params['b2'][0]
    out = ln(y + f, params['g2'], params['be2'])
    return out.reshape(B, T, N, -1)


if __name__ == "__main__":
    # MyBlock(numnodes=4, input_dim=8, hidden_dim=8, out_dim=8,
    #         a_query=16, a_value=16, a_nheads=4)
    # (out_dim == input_dim is required by the module's FFN residual connection.)
    B, T, N, F = 2, 8, 4, 8
    hidden_dim = 8
    out_dim = F
    num_heads, query_dim, value_dim = 4, 16, 16
    D = N * F

    key = jax.random.PRNGKey(0)
    kx, kp = jax.random.split(key)
    x = jax.random.normal(kx, (B, T, N, F), jnp.float32)
    params = init_params(kp, D, num_heads, query_dim, value_dim,
                         ffn_hidden=N * hidden_dim, ffn_out=N * out_dim)

    out = myblock_forward(x, params, num_heads, query_dim, value_dim)
    out = jax.block_until_ready(out)

    ref = reference(x, params, num_heads, query_dim, value_dim)
    assert out.shape == (B, T, N, out_dim), out.shape
    # Tolerance widened for bf16 MXU operands (f32 accumulation / f32 reference).
    err = jnp.max(jnp.abs(out - ref))
    assert jnp.allclose(out, ref, atol=5e-2, rtol=5e-2), f"max abs err {err}"
    print("KERNEL_OK")
</pallas_src>

<mosaic_0001>
module attributes {stable_mosaic.version = 11 : i64} {
  func.func @myblock_kernel(%arg0: i32, %arg1: memref<16x32xf32, #tpu.memory_space<vmem>>, %arg2: memref<160x192xbf16, #tpu.memory_space<vmem>>, %arg3: memref<8x192xf32, #tpu.memory_space<vmem>>, %arg4: memref<16x32xf32, #tpu.memory_space<vmem>>) attributes {dimension_semantics = [#tpu.dimension_semantics<parallel>], iteration_bounds = array<i64: 1>, scalar_prefetch = 0 : i64, scratch_operands = 0 : i64, tpu.core_type = #tpu.core_type<tc>, window_params = [{transform_indices = @transform_0, window_bounds = array<i64: 16, 32>}, {pipeline_mode = #tpu.pipeline_mode<synchronous>, transform_indices = @transform_1, window_bounds = array<i64: 160, 192>}, {pipeline_mode = #tpu.pipeline_mode<synchronous>, transform_indices = @transform_2, window_bounds = array<i64: 8, 192>}, {transform_indices = @transform_3, window_bounds = array<i64: 16, 32>}]} {
    %c0 = arith.constant 0 : index
    %c0_0 = arith.constant 0 : index
    %0 = vector.load %arg1[%c0, %c0_0] : memref<16x32xf32, #tpu.memory_space<vmem>>, vector<16x32xf32>
    %1 = arith.truncf %0 : vector<16x32xf32> to vector<16x32xbf16>
    %c0_1 = arith.constant 0 : index
    %c0_2 = arith.constant 0 : index
    %2 = vector.load %arg3[%c0_1, %c0_2] : memref<8x192xf32, #tpu.memory_space<vmem>>, vector<8x192xf32>
    %3 = vector.extract_strided_slice %2 {offsets = [0, 0], sizes = [1, 192], strides = [1, 1]} : vector<8x192xf32> to vector<1x192xf32>
    %4 = vector.extract_strided_slice %2 {offsets = [1, 0], sizes = [1, 32], strides = [1, 1]} : vector<8x192xf32> to vector<1x32xf32>
    %5 = vector.extract_strided_slice %2 {offsets = [2, 0], sizes = [1, 32], strides = [1, 1]} : vector<8x192xf32> to vector<1x32xf32>
    %6 = vector.extract_strided_slice %2 {offsets = [3, 0], sizes = [1, 32], strides = [1, 1]} : vector<8x192xf32> to vector<1x32xf32>
    %7 = vector.extract_strided_slice %2 {offsets = [4, 0], sizes = [1, 32], strides = [1, 1]} : vector<8x192xf32> to vector<1x32xf32>
    %8 = vector.extract_strided_slice %2 {offsets = [5, 0], sizes = [1, 32], strides = [1, 1]} : vector<8x192xf32> to vector<1x32xf32>
    %9 = vector.extract_strided_slice %2 {offsets = [6, 0], sizes = [1, 32], strides = [1, 1]} : vector<8x192xf32> to vector<1x32xf32>
    %10 = vector.extract_strided_slice %2 {offsets = [7, 0], sizes = [1, 32], strides = [1, 1]} : vector<8x192xf32> to vector<1x32xf32>
    %c0_3 = arith.constant 0 : index
    %c0_4 = arith.constant 0 : index
    %11 = vector.load %arg2[%c0_3, %c0_4] : memref<160x192xbf16, #tpu.memory_space<vmem>>, vector<32x192xbf16>
    %cst = arith.constant dense<0.000000e+00> : vector<16x192xf32>
    %12 = tpu.matmul %1, %11, %cst {dimension_numbers = #tpu.dot_dimension_numbers<[1], [0], [0], [1], [0, 0, 1, 1], [], []>} : vector<16x32xbf16>, vector<32x192xbf16>, vector<16x192xf32> -> vector<16x192xf32>
    %13 = vector.broadcast %3 : vector<1x192xf32> to vector<16x192xf32>
    %14 = arith.addf %12, %13 : vector<16x192xf32>
    %15 = vector.extract_strided_slice %14 {offsets = [0, 0], sizes = [16, 16], strides = [1, 1]} : vector<16x192xf32> to vector<16x16xf32>
    %16 = vector.shape_cast %15 : vector<16x16xf32> to vector<2x8x16xf32>
    %17 = vector.extract_strided_slice %14 {offsets = [0, 16], sizes = [16, 16], strides = [1, 1]} : vector<16x192xf32> to vector<16x16xf32>
    %18 = vector.shape_cast %17 : vector<16x16xf32> to vector<2x8x16xf32>
    %19 = vector.extract_strided_slice %14 {offsets = [0, 32], sizes = [16, 16], strides = [1, 1]} : vector<16x192xf32> to vector<16x16xf32>
    %20 = vector.shape_cast %19 : vector<16x16xf32> to vector<2x8x16xf32>
    %21 = vector.extract_strided_slice %14 {offsets = [0, 48], sizes = [16, 16], strides = [1, 1]} : vector<16x192xf32> to vector<16x16xf32>
    %22 = vector.shape_cast %21 : vector<16x16xf32> to vector<2x8x16xf32>
    %23 = tpu.concatenate %16, %18, %20, %22 in 0 : vector<2x8x16xf32>, vector<2x8x16xf32>, vector<2x8x16xf32>, vector<2x8x16xf32> -> vector<8x8x16xf32>
    %24 = arith.truncf %23 : vector<8x8x16xf32> to vector<8x8x16xbf16>
    %25 = vector.extract_strided_slice %14 {offsets = [0, 64], sizes = [16, 16], strides = [1, 1]} : vector<16x192xf32> to vector<16x16xf32>
    %26 = vector.shape_cast %25 : vector<16x16xf32> to vector<2x8x16xf32>
    %27 = vector.extract_strided_slice %14 {offsets = [0, 80], sizes = [16, 16], strides = [1, 1]} : vector<16x192xf32> to vector<16x16xf32>
    %28 = vector.shape_cast %27 : vector<16x16xf32> to vector<2x8x16xf32>
    %29 = vector.extract_strided_slice %14 {offsets = [0, 96], sizes = [16, 16], strides = [1, 1]} : vector<16x192xf32> to vector<16x16xf32>
    %30 = vector.shape_cast %29 : vector<16x16xf32> to vector<2x8x16xf32>
    %31 = vector.extract_strided_slice %14 {offsets = [0, 112], sizes = [16, 16], strides = [1, 1]} : vector<16x192xf32> to vector<16x16xf32>
    %32 = vector.shape_cast %31 : vector<16x16xf32> to vector<2x8x16xf32>
    %33 = tpu.concatenate %26, %28, %30, %32 in 0 : vector<2x8x16xf32>, vector<2x8x16xf32>, vector<2x8x16xf32>, vector<2x8x16xf32> -> vector<8x8x16xf32>
    %34 = arith.truncf %33 : vector<8x8x16xf32> to vector<8x8x16xbf16>
    %35 = vector.extract_strided_slice %14 {offsets = [0, 128], sizes = [16, 16], strides = [1, 1]} : vector<16x192xf32> to vector<16x16xf32>
    %36 = vector.shape_cast %35 : vector<16x16xf32> to vector<2x8x16xf32>
    %37 = vector.extract_strided_slice %14 {offsets = [0, 144], sizes = [16, 16], strides = [1, 1]} : vector<16x192xf32> to vector<16x16xf32>
    %38 = vector.shape_cast %37 : vector<16x16xf32> to vector<2x8x16xf32>
    %39 = vector.extract_strided_slice %14 {offsets = [0, 160], sizes = [16, 16], strides = [1, 1]} : vector<16x192xf32> to vector<16x16xf32>
    %40 = vector.shape_cast %39 : vector<16x16xf32> to vector<2x8x16xf32>
    %41 = vector.extract_strided_slice %14 {offsets = [0, 176], sizes = [16, 16], strides = [1, 1]} : vector<16x192xf32> to vector<16x16xf32>
    %42 = vector.shape_cast %41 : vector<16x16xf32> to vector<2x8x16xf32>
    %43 = tpu.concatenate %36, %38, %40, %42 in 0 : vector<2x8x16xf32>, vector<2x8x16xf32>, vector<2x8x16xf32>, vector<2x8x16xf32> -> vector<8x8x16xf32>
    %44 = arith.truncf %43 : vector<8x8x16xf32> to vector<8x8x16xbf16>
    "tpu.trace_start"() <{level = 10 : i32, message = "gtd,gsd->gts"}> : () -> ()
    %cst_5 = arith.constant dense<0.000000e+00> : vector<8x8x8xf32>
    %45 = tpu.matmul %24, %34, %cst_5 {dimension_numbers = #tpu.dot_dimension_numbers<[2], [2], [1], [1], [0, 0, 0, 1, 1, 1], [0], [0]>} : vector<8x8x16xbf16>, vector<8x8x16xbf16>, vector<8x8x8xf32> -> vector<8x8x8xf32>
    "tpu.trace_stop"() : () -> ()
    %cst_6 = arith.constant dense<0xFF800000> : vector<8x8xf32>
    %46 = vector.multi_reduction <maximumf>, %45, %cst_6 [2] : vector<8x8x8xf32> to vector<8x8xf32>
    %47 = vector.shape_cast %46 : vector<8x8xf32> to vector<8x8x1xf32>
    %48 = vector.broadcast %47 : vector<8x8x1xf32> to vector<8x8x8xf32>
    %49 = arith.subf %45, %48 : vector<8x8x8xf32>
    %50 = math.exp %49 : vector<8x8x8xf32>
    %cst_7 = arith.constant dense<0.000000e+00> : vector<8x8xf32>
    %51 = vector.multi_reduction <add>, %50, %cst_7 [2] : vector<8x8x8xf32> to vector<8x8xf32>
    %52 = vector.shape_cast %51 : vector<8x8xf32> to vector<8x8x1xf32>
    %53 = tpu.reciprocal %52 {approx = true} : vector<8x8x1xf32> -> vector<8x8x1xf32>
    %54 = vector.broadcast %53 : vector<8x8x1xf32> to vector<8x8x8xf32>
    %55 = arith.mulf %50, %54 : vector<8x8x8xf32>
    %56 = arith.truncf %55 : vector<8x8x8xf32> to vector<8x8x8xbf16>
    "tpu.trace_start"() <{level = 10 : i32, message = "gts,gsd->gtd"}> : () -> ()
    %cst_8 = arith.constant dense<0.000000e+00> : vector<8x8x16xf32>
    %57 = tpu.matmul %56, %44, %cst_8 {dimension_numbers = #tpu.dot_dimension_numbers<[2], [1], [1], [2], [0, 0, 0, 1, 1, 2], [0], [0]>} : vector<8x8x8xbf16>, vector<8x8x16xbf16>, vector<8x8x16xf32> -> vector<8x8x16xf32>
    "tpu.trace_stop"() : () -> ()
    %58 = vector.extract_strided_slice %57 {offsets = [0, 0, 0], sizes = [2, 8, 16], strides = [1, 1, 1]} : vector<8x8x16xf32> to vector<2x8x16xf32>
    %59 = vector.shape_cast %58 : vector<2x8x16xf32> to vector<16x16xf32>
    %60 = vector.extract_strided_slice %57 {offsets = [2, 0, 0], sizes = [2, 8, 16], strides = [1, 1, 1]} : vector<8x8x16xf32> to vector<2x8x16xf32>
    %61 = vector.shape_cast %60 : vector<2x8x16xf32> to vector<16x16xf32>
    %62 = vector.extract_strided_slice %57 {offsets = [4, 0, 0], sizes = [2, 8, 16], strides = [1, 1, 1]} : vector<8x8x16xf32> to vector<2x8x16xf32>
    %63 = vector.shape_cast %62 : vector<2x8x16xf32> to vector<16x16xf32>
    %64 = vector.extract_strided_slice %57 {offsets = [6, 0, 0], sizes = [2, 8, 16], strides = [1, 1, 1]} : vector<8x8x16xf32> to vector<2x8x16xf32>
    %65 = vector.shape_cast %64 : vector<2x8x16xf32> to vector<16x16xf32>
    %66 = tpu.concatenate %59, %61, %63, %65 in 1 : vector<16x16xf32>, vector<16x16xf32>, vector<16x16xf32>, vector<16x16xf32> -> vector<16x64xf32>
    %c32 = arith.constant 32 : index
    %c0_9 = arith.constant 0 : index
    %67 = vector.load %arg2[%c32, %c0_9] : memref<160x192xbf16, #tpu.memory_space<vmem>>, vector<64x32xbf16>
    %68 = arith.truncf %66 : vector<16x64xf32> to vector<16x64xbf16>
    %cst_10 = arith.constant dense<0.000000e+00> : vector<16x32xf32>
    %69 = tpu.matmul %68, %67, %cst_10 {dimension_numbers = #tpu.dot_dimension_numbers<[1], [0], [0], [1], [0, 0, 1, 1], [], []>} : vector<16x64xbf16>, vector<64x32xbf16>, vector<16x32xf32> -> vector<16x32xf32>
    %70 = vector.broadcast %4 : vector<1x32xf32> to vector<16x32xf32>
    %71 = arith.addf %69, %70 : vector<16x32xf32>
    %72 = arith.addf %71, %0 : vector<16x32xf32>
    %cst_11 = arith.constant dense<0.000000e+00> : vector<16xf32>
    %73 = vector.multi_reduction <add>, %72, %cst_11 [1] : vector<16x32xf32> to vector<16xf32>
    %74 = vector.shape_cast %73 : vector<16xf32> to vector<16x1xf32>
    %cst_12 = arith.constant 3.200000e+01 : f32
    %75 = vector.broadcast %cst_12 : f32 to vector<16x1xf32>
    %76 = arith.divf %74, %75 : vector<16x1xf32>
    %77 = vector.broadcast %76 : vector<16x1xf32> to vector<16x32xf32>
    %78 = arith.subf %72, %77 : vector<16x32xf32>
    %79 = arith.mulf %78, %78 : vector<16x32xf32>
    %cst_13 = arith.constant dense<0.000000e+00> : vector<16xf32>
    %80 = vector.multi_reduction <add>, %79, %cst_13 [1] : vector<16x32xf32> to vector<16xf32>
    %81 = vector.shape_cast %80 : vector<16xf32> to vector<16x1xf32>
    %cst_14 = arith.constant 3.200000e+01 : f32
    %82 = vector.broadcast %cst_14 : f32 to vector<16x1xf32>
    %83 = arith.divf %81, %82 : vector<16x1xf32>
    %84 = vector.broadcast %76 : vector<16x1xf32> to vector<16x32xf32>
    %85 = arith.subf %72, %84 : vector<16x32xf32>
    %cst_15 = arith.constant 9.99999974E-6 : f32
    %86 = vector.broadcast %cst_15 : f32 to vector<16x1xf32>
    %87 = arith.addf %83, %86 : vector<16x1xf32>
    %88 = math.rsqrt %87 : vector<16x1xf32>
    %89 = vector.broadcast %88 : vector<16x1xf32> to vector<16x32xf32>
    %90 = arith.mulf %85, %89 : vector<16x32xf32>
    %91 = vector.broadcast %5 : vector<1x32xf32> to vector<16x32xf32>
    %92 = arith.mulf %90, %91 : vector<16x32xf32>
    %93 = vector.broadcast %6 : vector<1x32xf32> to vector<16x32xf32>
    %94 = arith.addf %92, %93 : vector<16x32xf32>
    %c96 = arith.constant 96 : index
    %c0_16 = arith.constant 0 : index
    %95 = vector.load %arg2[%c96, %c0_16] : memref<160x192xbf16, #tpu.memory_space<vmem>>, vector<32x32xbf16>
    %c128 = arith.constant 128 : index
    %c0_17 = arith.constant 0 : index
    %96 = vector.load %arg2[%c128, %c0_17] : memref<160x192xbf16, #tpu.memory_space<vmem>>, vector<32x32xbf16>
    %97 = arith.truncf %94 : vector<16x32xf32> to vector<16x32xbf16>
    %cst_18 = arith.constant dense<0.000000e+00> : vector<16x32xf32>
    %98 = tpu.matmul %97, %95, %cst_18 {dimension_numbers = #tpu.dot_dimension_numbers<[1], [0], [0], [1], [0, 0, 1, 1], [], []>} : vector<16x32xbf16>, vector<32x32xbf16>, vector<16x32xf32> -> vector<16x32xf32>
    %99 = vector.broadcast %7 : vector<1x32xf32> to vector<16x32xf32>
    %100 = arith.addf %98, %99 : vector<16x32xf32>
    %cst_19 = arith.constant 0.000000e+00 : f32
    %101 = vector.broadcast %cst_19 : f32 to vector<16x32xf32>
    %102 = arith.maximumf %100, %101 : vector<16x32xf32>
    %103 = arith.truncf %102 : vector<16x32xf32> to vector<16x32xbf16>
    %cst_20 = arith.constant dense<0.000000e+00> : vector<16x32xf32>
    %104 = tpu.matmul %103, %96, %cst_20 {dimension_numbers = #tpu.dot_dimension_numbers<[1], [0], [0], [1], [0, 0, 1, 1], [], []>} : vector<16x32xbf16>, vector<32x32xbf16>, vector<16x32xf32> -> vector<16x32xf32>
    %105 = vector.broadcast %8 : vector<1x32xf32> to vector<16x32xf32>
    %106 = arith.addf %104, %105 : vector<16x32xf32>
    %107 = arith.addf %94, %106 : vector<16x32xf32>
    %cst_21 = arith.constant dense<0.000000e+00> : vector<16xf32>
    %108 = vector.multi_reduction <add>, %107, %cst_21 [1] : vector<16x32xf32> to vector<16xf32>
    %109 = vector.shape_cast %108 : vector<16xf32> to vector<16x1xf32>
    %cst_22 = arith.constant 3.200000e+01 : f32
    %110 = vector.broadcast %cst_22 : f32 to vector<16x1xf32>
    %111 = arith.divf %109, %110 : vector<16x1xf32>
    %112 = vector.broadcast %111 : vector<16x1xf32> to vector<16x32xf32>
    %113 = arith.subf %107, %112 : vector<16x32xf32>
    %114 = arith.mulf %113, %113 : vector<16x32xf32>
    %cst_23 = arith.constant dense<0.000000e+00> : vector<16xf32>
    %115 = vector.multi_reduction <add>, %114, %cst_23 [1] : vector<16x32xf32> to vector<16xf32>
    %116 = vector.shape_cast %115 : vector<16xf32> to vector<16x1xf32>
    %cst_24 = arith.constant 3.200000e+01 : f32
    %117 = vector.broadcast %cst_24 : f32 to vector<16x1xf32>
    %118 = arith.divf %116, %117 : vector<16x1xf32>
    %119 = vector.broadcast %111 : vector<16x1xf32> to vector<16x32xf32>
    %120 = arith.subf %107, %119 : vector<16x32xf32>
    %cst_25 = arith.constant 9.99999974E-6 : f32
    %121 = vector.broadcast %cst_25 : f32 to vector<16x1xf32>
    %122 = arith.addf %118, %121 : vector<16x1xf32>
    %123 = math.rsqrt %122 : vector<16x1xf32>
    %124 = vector.broadcast %123 : vector<16x1xf32> to vector<16x32xf32>
    %125 = arith.mulf %120, %124 : vector<16x32xf32>
    %126 = vector.broadcast %9 : vector<1x32xf32> to vector<16x32xf32>
    %127 = arith.mulf %125, %126 : vector<16x32xf32>
    %128 = vector.broadcast %10 : vector<1x32xf32> to vector<16x32xf32>
    %129 = arith.addf %127, %128 : vector<16x32xf32>
    %c0_26 = arith.constant 0 : index
    %c0_27 = arith.constant 0 : index
    %130 = vector.load %arg4[%c0_26, %c0_27] : memref<16x32xf32, #tpu.memory_space<vmem>>, vector<16x32xf32>
    tpu.vector_store %arg4[%c0_26, %c0_27], %129 {strides = array<i32>} : memref<16x32xf32, #tpu.memory_space<vmem>>, vector<16x32xf32>,
    return
  }
  func.func @transform_0(%arg0: i32) -> (i32, i32) {
    %c0_i32 = arith.constant 0 : i32
    %c0_i32_0 = arith.constant 0 : i32
    return %arg0, %c0_i32 : i32, i32
  }
  func.func @transform_1(%arg0: i32) -> (i32, i32) {
    %c0_i32 = arith.constant 0 : i32
    %c0_i32_0 = arith.constant 0 : i32
    %c0_i32_1 = arith.constant 0 : i32
    return %c0_i32, %c0_i32_0 : i32, i32
  }
  func.func @transform_2(%arg0: i32) -> (i32, i32) {
    %c0_i32 = arith.constant 0 : i32
    %c0_i32_0 = arith.constant 0 : i32
    %c0_i32_1 = arith.constant 0 : i32
    return %c0_i32, %c0_i32_0 : i32, i32
  }
  func.func @transform_3(%arg0: i32) -> (i32, i32) {
    %c0_i32 = arith.constant 0 : i32
    %c0_i32_0 = arith.constant 0 : i32
    return %arg0, %c0_i32 : i32, i32
  }
}

</mosaic_0001>

<llo_original>
// kernel: tpu_custom_call.1
$region0: #{tpu_custom_call.1}
  #allocation0 [shape = 'u32[]', space=smem, size = 0x4, offset = 0x4, fixed_abs, tag = 'smem constant byte address 0x4 - core index']
  #allocation1 [shape = 'u32[144,128]{1,0:T(1,128)}', space=vmem, size = 0x12000, scoped, tag = 'internal scratch']
  %s0 = inlined_call_operand.hbm [shape: f32[16,32], index: 0, kind: input, shape index: {}]
  %s1 = inlined_call_operand.hbm [shape: bf16[160,192], index: 1, kind: input, shape index: {}]
  %s2 = inlined_call_operand.hbm [shape: f32[8,192], index: 2, kind: input, shape index: {}]
  %s3 = inlined_call_operand.hbm [shape: f32[16,32], index: 3, kind: output, shape index: {}]
  %s4 = sld [smem:[#allocation0]]
  $region34: #{tpu_custom_call.1} parent=0
    _
  %s6 = ssub.s32 1, %s4
  %s7 = scalar_select 0, %s6, %s4
  $region1: #{tpu_custom_call.1} parent=0
    #allocation2 [shape = 'u8[8192]{0}', space=vmem, size = 0x2000, scoped, tag = 'input window, operand 0, single buffered']
    #allocation3 [shape = 's32[1]{0}', space=sflag, size = 0x4, scoped, tag = 'scoped memory for tpu_custom_call.1']
    #allocation4 [shape = 's32[1]{0}', space=sflag, size = 0x4, scoped, tag = 'scoped memory for tpu_custom_call.1']
    #allocation5 [shape = 'u8[81920]{0}', space=vmem, size = 0x14000, scoped, tag = 'input window, operand 1, single buffered']
    #allocation6 [shape = 's32[1]{0}', space=sflag, size = 0x4, scoped, tag = 'scoped memory for tpu_custom_call.1']
    #allocation7 [shape = 'u8[8192]{0}', space=vmem, size = 0x2000, scoped, tag = 'input window, operand 2, single buffered']
    #allocation8 [shape = 'u8[8192]{0}', space=vmem, size = 0x2000, scoped, tag = 'output window, operand 0, single buffered']
    %8 = vsyncpa [#allocation3], 0
    %9 = vsyncpa [#allocation6], 0
    %10 = vsyncpa [#allocation4], 0
    // Predicated region
    $region2: #{tpu_custom_call.1} parent=1 // pred_check
      _
    $region3: #{tpu_custom_call.1} parent=1 // pred_check_branch
      %12 = sbr.rel (0) target = $region5
    $region4: #{tpu_custom_call.1} parent=1 // pred_region
      %s14 = ssub.s32 256, 256
      %15 = vsyncadd [#allocation3], %s14
      %s16 = sshll.u32 [#allocation2], 4
      %s17 = int_to_ptr.vmem [resolvable:$true] %s16
      %22 = dma.hbm_to_vmem [thread:$0]  %s0, 256, %s17, [#allocation3], 128, 128, 8
    $region5: #{tpu_custom_call.1} parent=1 // pred_fallthru
      _
    // Predicated region
    $region6: #{tpu_custom_call.1} parent=1 // pred_check
      _
    $region7: #{tpu_custom_call.1} parent=1 // pred_check_branch
      %24 = sbr.rel (0) target = $region9
    $region8: #{tpu_custom_call.1} parent=1 // pred_region
      %s26 = ssub.s32 2560, 2560
      %27 = vsyncadd [#allocation6], %s26
      %s28 = sshll.u32 [#allocation5], 4
      %s29 = int_to_ptr.vmem [resolvable:$true] %s28
      %34 = dma.hbm_to_vmem [thread:$0]  %s1, 2560, %s29, [#allocation6], 128, 128, 8
    $region9: #{tpu_custom_call.1} parent=1 // pred_fallthru
      _
    // Predicated region
    $region10: #{tpu_custom_call.1} parent=1 // pred_check
      _
    $region11: #{tpu_custom_call.1} parent=1 // pred_check_branch
      %36 = sbr.rel (0) target = $region13
    $region12: #{tpu_custom_call.1} parent=1 // pred_region
      %s38 = ssub.s32 256, 256
      %39 = vsyncadd [#allocation6], %s38
      %s41 = sshll.u32 [#allocation7], 4
      %s42 = int_to_ptr.vmem [resolvable:$true] %s41
      %44 = dma.hbm_to_vmem [thread:$0]  %s2, 256, %s42, [#allocation6]
    $region13: #{tpu_custom_call.1} parent=1 // pred_fallthru
      _
    // Predicated region
    $region14: #{tpu_custom_call.1} parent=1 // pred_check
      _
    $region15: #{tpu_custom_call.1} parent=1 // pred_check_branch
      %46 = sbr.rel (0) target = $region17
    $region16: #{tpu_custom_call.1} parent=1 // pred_region
      %47 = dma.done [#allocation3], 256
    $region17: #{tpu_custom_call.1} parent=1 // pred_fallthru
      _
    // Predicated region
    $region18: #{tpu_custom_call.1} parent=1 // pred_check
      _
    $region19: #{tpu_custom_call.1} parent=1 // pred_check_branch
      %49 = sbr.rel (0) target = $region21
    $region20: #{tpu_custom_call.1} parent=1 // pred_region
      %50 = dma.done [#allocation6], 2560
    $region21: #{tpu_custom_call.1} parent=1 // pred_fallthru
      _
    // Predicated region
    $region22: #{tpu_custom_call.1} parent=1 // pred_check
      _
    $region23: #{tpu_custom_call.1} parent=1 // pred_check_branch
      %52 = sbr.rel (0) target = $region25
    $region24: #{tpu_custom_call.1} parent=1 // pred_region
      %53 = dma.done [#allocation6], 256
    $region25: #{tpu_custom_call.1} parent=1 // pred_fallthru
      _
    %v55 = vld [vmem:[#allocation2] sm:$0xff]
    %v56 = vld [vmem:[#allocation2 + $0x8] sm:$0xff]
    %v57 = vpack.c.bf16 %v56, %v55
    %v58 = vld [vmem:[#allocation7] sm:$0xff]
    %v59 = vld [vmem:[#allocation7 + $0x8] sm:$0xff]
    %v60 = vld [vmem:[#allocation5] sm:$0xff]
    %v61 = vld [vmem:[#allocation5 + $0x8] sm:$0xff]
    %v62 = vld [vmem:[#allocation5 + $0x10] sm:$0xff]
    %v63 = vld [vmem:[#allocation5 + $0x18] sm:$0xff]
    %v64 = vlaneseq
    %v65 = vshrl.u32 %v64, 7
    %v66 = vsub.s32 0, %v65
    %v67 = vrot.slane %v58, %v66
    %v68 = vlaneseq
    %v69 = vshrl.u32 %v68, 7
    %v70 = vsub.s32 0, %v69
    %v71 = vrot.slane %v59, %v70
    %v76 = vunpack.c.l.b16 %v60
    %v77 = vunpack.c.h.b16 %v60
    %v78 = vunpack.c.l.b16 %v61
    %v79 = vunpack.c.h.b16 %v61
    %v80 = vunpack.c.l.b16 %v62
    %v81 = vunpack.c.h.b16 %v62
    %v82 = vunpack.c.l.b16 %v63
    %v83 = vunpack.c.h.b16 %v63
    %v84 = vpack.c.b16 %v78, %v76
    %v85 = vpack.c.b16 %v79, %v77
    %v86 = vpack.c.b16 %v82, %v80
    %v87 = vpack.c.b16 %v83, %v81
    %vm92 = vcmask 261120
    %v94 = vsel %vm92, %v57, 0
    %96 = vmatprep.subr.bf16.mxu0 %v85
    %97 = vmatpush1.bf16.msra.mxu0 %v84
    %98 = vmatprep.subr.bf16.mxu0 %v87
    %99 = vmatpush1.bf16.msra.mxu0 %v86
    %100 = vmatprep.subr.bf16.mxu0 0
    %101 = vmatpush1.bf16.msra.mxu0 0
    %102 = vmatprep.subr.bf16.mxu0 0
    %103 = vmatpush1.bf16.msra.mxu0 0
    %104 = vmatprep.subr.bf16.mxu0 0
    %105 = vmatpush1.bf16.msra.mxu0 0
    %106 = vmatprep.subr.bf16.mxu0 0
    %107 = vmatpush1.bf16.msra.mxu0 0
    %108 = vmatprep.subr.bf16.mxu0 0
    %109 = vmatpush1.bf16.msra.mxu0 0
    %110 = vmatprep.subr.bf16.mxu0 0
    %111 = vmatpush1.bf16.msra.mxu0 0
    %112 = vmatprep.subr.bf16.mxu0 0
    %113 = vmatpush1.bf16.msra.mxu0 0
    %114 = vmatprep.subr.bf16.mxu0 0
    %115 = vmatpush1.bf16.msra.mxu0 0
    %116 = vmatprep.subr.bf16.mxu0 0
    %117 = vmatpush1.bf16.msra.mxu0 0
    %118 = vmatprep.subr.bf16.mxu0 0
    %119 = vmatpush1.bf16.msra.mxu0 0
    %120 = vmatprep.subr.bf16.mxu0 0
    %121 = vmatpush1.bf16.msra.mxu0 0
    %122 = vmatprep.subr.bf16.mxu0 0
    %123 = vmatpush1.bf16.msra.mxu0 0
    %124 = vmatprep.subr.bf16.mxu0 0
    %125 = vmatpush1.bf16.msra.mxu0 0
    %126 = vmatprep.subr.bf16.mxu0 0
    %127 = vmatpush1.bf16.msra.mxu0 0
    %128 = vmatprep.mubr.bf16.mxu0 0
    %129 = vmatmul.mubr.bf16.gmra.mrb[0].mxu0 %v94
    %v130 = vpop.f32.mrb[0].mxu0
    %v131 = vadd.f32 %v67, %v130
    %v132 = vpop.f32.mrb[0].mxu0
    %v133 = vadd.f32 %v71, %v132
    %v134 = vpop.f32.mrb[0].mxu0
    %v135 = vadd.f32 %v67, %v134
    %v136 = vpop.f32.mrb[0].mxu0
    %v137 = vadd.f32 %v71, %v136
    %138 = vdwg.mxu0
    %141 = vrot.lane.b32.xlu0 %v131, 112
    %v142 = vpop.permute.xlu0 %141
    %143 = vrot.lane.b32.xlu0 %v135, 112
    %v144 = vpop.permute.xlu0 %143
    %147 = vrot.lane.b32.xlu0 %v131, 96
    %v148 = vpop.permute.xlu0 %147
    %149 = vrot.lane.b32.xlu0 %v135, 96
    %v150 = vpop.permute.xlu0 %149
    %153 = vrot.lane.b32.xlu0 %v131, 80
    %v154 = vpop.permute.xlu0 %153
    %155 = vrot.lane.b32.xlu0 %v135, 80
    %v156 = vpop.permute.xlu0 %155
    %v159 = vpack.c.bf16 %v131, %v131
    %v160 = vpack.c.bf16 %v135, %v135
    %v161 = vpack.c.bf16 %v142, %v142
    %v162 = vpack.c.bf16 %v144, %v144
    %v163 = vpack.c.bf16 %v148, %v148
    %v164 = vpack.c.bf16 %v150, %v150
    %v165 = vpack.c.bf16 %v154, %v154
    %v166 = vpack.c.bf16 %v156, %v156
    %169 = vrot.lane.b32.xlu0 %v133, 112
    %v170 = vpop.permute.xlu0 %169
    %171 = vrot.lane.b32.xlu0 %v137, 112
    %v172 = vpop.permute.xlu0 %171
    %175 = vrot.lane.b32.xlu0 %v133, 96
    %v176 = vpop.permute.xlu0 %175
    %177 = vrot.lane.b32.xlu0 %v137, 96
    %v178 = vpop.permute.xlu0 %177
    %181 = vrot.lane.b32.xlu0 %v133, 80
    %v182 = vpop.permute.xlu0 %181
    %183 = vrot.lane.b32.xlu0 %v137, 80
    %v184 = vpop.permute.xlu0 %183
    %v187 = vpack.c.bf16 %v133, %v133
    %v188 = vpack.c.bf16 %v137, %v137
    %v189 = vpack.c.bf16 %v170, %v170
    %v190 = vpack.c.bf16 %v172, %v172
    %v191 = vpack.c.bf16 %v176, %v176
    %v192 = vpack.c.bf16 %v178, %v178
    %v193 = vpack.c.bf16 %v182, %v182
    %v194 = vpack.c.bf16 %v184, %v184
    %196 = vrot.lane.b32.xlu0 %v159, 64
    %v197 = vpop.permute.xlu0 %196
    %vm198 = vcmask 130048
    %v200 = vsel %vm198, %v159, 0
    %v203 = vsel %vm198, %v197, 0
    %205 = vmatprep.subr.bf16.mxu0 0
    %206 = vmatpush1.bf16.xpose.msra.mxu0 %v203
    %207 = vmatprep.subr.bf16.mxu0 0
    %208 = vmatpush1.bf16.xpose.msra.mxu0 0
    %209 = vmatprep.subr.bf16.mxu0 0
    %210 = vmatpush1.bf16.xpose.msra.mxu0 0
    %211 = vmatprep.subr.bf16.mxu0 0
    %212 = vmatpush1.bf16.xpose.msra.mxu0 0
    %213 = vmatprep.subr.bf16.mxu0 0
    %214 = vmatpush1.bf16.xpose.msra.mxu0 0
    %215 = vmatprep.subr.bf16.mxu0 0
    %216 = vmatpush1.bf16.xpose.msra.mxu0 0
    %217 = vmatprep.subr.bf16.mxu0 0
    %218 = vmatpush1.bf16.xpose.msra.mxu0 0
    %219 = vmatprep.subr.bf16.mxu0 0
    %220 = vmatpush1.bf16.xpose.msra.mxu0 0
    %221 = vmatprep.subr.bf16.mxu0 0
    %222 = vmatpush1.bf16.xpose.msra.mxu0 0
    %223 = vmatprep.subr.bf16.mxu0 0
    %224 = vmatpush1.bf16.xpose.msra.mxu0 0
    %225 = vmatprep.subr.bf16.mxu0 0
    %226 = vmatpush1.bf16.xpose.msra.mxu0 0
    %227 = vmatprep.subr.bf16.mxu0 0
    %228 = vmatpush1.bf16.xpose.msra.mxu0 0
    %229 = vmatprep.subr.bf16.mxu0 0
    %230 = vmatpush1.bf16.xpose.msra.mxu0 0
    %231 = vmatprep.subr.bf16.mxu0 0
    %232 = vmatpush1.bf16.xpose.msra.mxu0 0
    %233 = vmatprep.subr.bf16.mxu0 0
    %234 = vmatpush1.bf16.xpose.msra.mxu0 0
    %235 = vmatprep.subr.bf16.mxu0 0
    %236 = vmatpush1.bf16.xpose.msra.mxu0 0
    %237 = vmatprep.mubr.bf16.mxu0 0
    %238 = vmatmul.mubr.bf16.gmra.mrb[0].mxu0 %v200
    %v239 = vpop.f32.mrb[0].mxu0
    %v240 = vadd.f32 0.0, %v239
    %v241 = vpop.f32.mrb[0].mxu0
    %v242 = vpop.f32.mrb[0].mxu0
    %v243 = vpop.f32.mrb[0].mxu0
    %244 = vdwg.mxu0
    %246 = vrot.lane.b32.xlu0 %v160, 64
    %v247 = vpop.permute.xlu0 %246
    %v249 = vsel %vm198, %v160, 0
    %v252 = vsel %vm198, %v247, 0
    %254 = vmatprep.subr.bf16.mxu0 0
    %255 = vmatpush1.bf16.xpose.msra.mxu0 %v252
    %256 = vmatprep.subr.bf16.mxu0 0
    %257 = vmatpush1.bf16.xpose.msra.mxu0 0
    %258 = vmatprep.subr.bf16.mxu0 0
    %259 = vmatpush1.bf16.xpose.msra.mxu0 0
    %260 = vmatprep.subr.bf16.mxu0 0
    %261 = vmatpush1.bf16.xpose.msra.mxu0 0
    %262 = vmatprep.subr.bf16.mxu0 0
    %263 = vmatpush1.bf16.xpose.msra.mxu0 0
    %264 = vmatprep.subr.bf16.mxu0 0
    %265 = vmatpush1.bf16.xpose.msra.mxu0 0
    %266 = vmatprep.subr.bf16.mxu0 0
    %267 = vmatpush1.bf16.xpose.msra.mxu0 0
    %268 = vmatprep.subr.bf16.mxu0 0
    %269 = vmatpush1.bf16.xpose.msra.mxu0 0
    %270 = vmatprep.subr.bf16.mxu0 0
    %271 = vmatpush1.bf16.xpose.msra.mxu0 0
    %272 = vmatprep.subr.bf16.mxu0 0
    %273 = vmatpush1.bf16.xpose.msra.mxu0 0
    %274 = vmatprep.subr.bf16.mxu0 0
    %275 = vmatpush1.bf16.xpose.msra.mxu0 0
    %276 = vmatprep.subr.bf16.mxu0 0
    %277 = vmatpush1.bf16.xpose.msra.mxu0 0
    %278 = vmatprep.subr.bf16.mxu0 0
    %279 = vmatpush1.bf16.xpose.msra.mxu0 0
    %280 = vmatprep.subr.bf16.mxu0 0
    %281 = vmatpush1.bf16.xpose.msra.mxu0 0
    %282 = vmatprep.subr.bf16.mxu0 0
    %283 = vmatpush1.bf16.xpose.msra.mxu0 0
    %284 = vmatprep.subr.bf16.mxu0 0
    %285 = vmatpush1.bf16.xpose.msra.mxu0 0
    %286 = vmatprep.mubr.bf16.mxu0 0
    %287 = vmatmul.mubr.bf16.gmra.mrb[0].mxu0 %v249
    %v288 = vpop.f32.mrb[0].mxu0
    %v289 = vadd.f32 0.0, %v288
    %v290 = vpop.f32.mrb[0].mxu0
    %v291 = vpop.f32.mrb[0].mxu0
    %v292 = vpop.f32.mrb[0].mxu0
    %293 = vdwg.mxu0
    %295 = vrot.lane.b32.xlu0 %v161, 64
    %v296 = vpop.permute.xlu0 %295
    %v298 = vsel %vm198, %v161, 0
    %v301 = vsel %vm198, %v296, 0
    %303 = vmatprep.subr.bf16.mxu0 0
    %304 = vmatpush1.bf16.xpose.msra.mxu0 %v301
    %305 = vmatprep.subr.bf16.mxu0 0
    %306 = vmatpush1.bf16.xpose.msra.mxu0 0
    %307 = vmatprep.subr.bf16.mxu0 0
    %308 = vmatpush1.bf16.xpose.msra.mxu0 0
    %309 = vmatprep.subr.bf16.mxu0 0
    %310 = vmatpush1.bf16.xpose.msra.mxu0 0
    %311 = vmatprep.subr.bf16.mxu0 0
    %312 = vmatpush1.bf16.xpose.msra.mxu0 0
    %313 = vmatprep.subr.bf16.mxu0 0
    %314 = vmatpush1.bf16.xpose.msra.mxu0 0
    %315 = vmatprep.subr.bf16.mxu0 0
    %316 = vmatpush1.bf16.xpose.msra.mxu0 0
    %317 = vmatprep.subr.bf16.mxu0 0
    %318 = vmatpush1.bf16.xpose.msra.mxu0 0
    %319 = vmatprep.subr.bf16.mxu0 0
    %320 = vmatpush1.bf16.xpose.msra.mxu0 0
    %321 = vmatprep.subr.bf16.mxu0 0
    %322 = vmatpush1.bf16.xpose.msra.mxu0 0
    %323 = vmatprep.subr.bf16.mxu0 0
    %324 = vmatpush1.bf16.xpose.msra.mxu0 0
    %325 = vmatprep.subr.bf16.mxu0 0
    %326 = vmatpush1.bf16.xpose.msra.mxu0 0
    %327 = vmatprep.subr.bf16.mxu0 0
    %328 = vmatpush1.bf16.xpose.msra.mxu0 0
    %329 = vmatprep.subr.bf16.mxu0 0
    %330 = vmatpush1.bf16.xpose.msra.mxu0 0
    %331 = vmatprep.subr.bf16.mxu0 0
    %332 = vmatpush1.bf16.xpose.msra.mxu0 0
    %333 = vmatprep.subr.bf16.mxu0 0
    %334 = vmatpush1.bf16.xpose.msra.mxu0 0
    %335 = vmatprep.mubr.bf16.mxu0 0
    %336 = vmatmul.mubr.bf16.gmra.mrb[0].mxu0 %v298
    %v337 = vpop.f32.mrb[0].mxu0
    %v338 = vadd.f32 0.0, %v337
    %v339 = vpop.f32.mrb[0].mxu0
    %v340 = vpop.f32.mrb[0].mxu0
    %v341 = vpop.f32.mrb[0].mxu0
    %342 = vdwg.mxu0
    %344 = vrot.lane.b32.xlu0 %v162, 64
    %v345 = vpop.permute.xlu0 %344
    %v347 = vsel %vm198, %v162, 0
    %v350 = vsel %vm198, %v345, 0
    %352 = vmatprep.subr.bf16.mxu0 0
    %353 = vmatpush1.bf16.xpose.msra.mxu0 %v350
    %354 = vmatprep.subr.bf16.mxu0 0
    %355 = vmatpush1.bf16.xpose.msra.mxu0 0
    %356 = vmatprep.subr.bf16.mxu0 0
    %357 = vmatpush1.bf16.xpose.msra.mxu0 0
    %358 = vmatprep.subr.bf16.mxu0 0
    %359 = vmatpush1.bf16.xpose.msra.mxu0 0
    %360 = vmatprep.subr.bf16.mxu0 0
    %361 = vmatpush1.bf16.xpose.msra.mxu0 0
    %362 = vmatprep.subr.bf16.mxu0 0
    %363 = vmatpush1.bf16.xpose.msra.mxu0 0
    %364 = vmatprep.subr.bf16.mxu0 0
    %365 = vmatpush1.bf16.xpose.msra.mxu0 0
    %366 = vmatprep.subr.bf16.mxu0 0
    %367 = vmatpush1.bf16.xpose.msra.mxu0 0
    %368 = vmatprep.subr.bf16.mxu0 0
    %369 = vmatpush1.bf16.xpose.msra.mxu0 0
    %370 = vmatprep.subr.bf16.mxu0 0
    %371 = vmatpush1.bf16.xpose.msra.mxu0 0
    %372 = vmatprep.subr.bf16.mxu0 0
    %373 = vmatpush1.bf16.xpose.msra.mxu0 0
    %374 = vmatprep.subr.bf16.mxu0 0
    %375 = vmatpush1.bf16.xpose.msra.mxu0 0
    %376 = vmatprep.subr.bf16.mxu0 0
    %377 = vmatpush1.bf16.xpose.msra.mxu0 0
    %378 = vmatprep.subr.bf16.mxu0 0
    %379 = vmatpush1.bf16.xpose.msra.mxu0 0
    %380 = vmatprep.subr.bf16.mxu0 0
    %381 = vmatpush1.bf16.xpose.msra.mxu0 0
    %382 = vmatprep.subr.bf16.mxu0 0
    %383 = vmatpush1.bf16.xpose.msra.mxu0 0
    %384 = vmatprep.mubr.bf16.mxu0 0
    %385 = vmatmul.mubr.bf16.gmra.mrb[0].mxu0 %v347
    %v386 = vpop.f32.mrb[0].mxu0
    %v387 = vadd.f32 0.0, %v386
    %v388 = vpop.f32.mrb[0].mxu0
    %v389 = vpop.f32.mrb[0].mxu0
    %v390 = vpop.f32.mrb[0].mxu0
    %391 = vdwg.mxu0
    %393 = vrot.lane.b32.xlu0 %v163, 64
    %v394 = vpop.permute.xlu0 %393
    %v396 = vsel %vm198, %v163, 0
    %v399 = vsel %vm198, %v394, 0
    %401 = vmatprep.subr.bf16.mxu0 0
    %402 = vmatpush1.bf16.xpose.msra.mxu0 %v399
    %403 = vmatprep.subr.bf16.mxu0 0
    %404 = vmatpush1.bf16.xpose.msra.mxu0 0
    %405 = vmatprep.subr.bf16.mxu0 0
    %406 = vmatpush1.bf16.xpose.msra.mxu0 0
    %407 = vmatprep.subr.bf16.mxu0 0
    %408 = vmatpush1.bf16.xpose.msra.mxu0 0
    %409 = vmatprep.subr.bf16.mxu0 0
    %410 = vmatpush1.bf16.xpose.msra.mxu0 0
    %411 = vmatprep.subr.bf16.mxu0 0
    %412 = vmatpush1.bf16.xpose.msra.mxu0 0
    %413 = vmatprep.subr.bf16.mxu0 0
    %414 = vmatpush1.bf16.xpose.msra.mxu0 0
    %415 = vmatprep.subr.bf16.mxu0 0
    %416 = vmatpush1.bf16.xpose.msra.mxu0 0
    %417 = vmatprep.subr.bf16.mxu0 0
    %418 = vmatpush1.bf16.xpose.msra.mxu0 0
    %419 = vmatprep.subr.bf16.mxu0 0
    %420 = vmatpush1.bf16.xpose.msra.mxu0 0
    %421 = vmatprep.subr.bf16.mxu0 0
    %422 = vmatpush1.bf16.xpose.msra.mxu0 0
    %423 = vmatprep.subr.bf16.mxu0 0
    %424 = vmatpush1.bf16.xpose.msra.mxu0 0
    %425 = vmatprep.subr.bf16.mxu0 0
    %426 = vmatpush1.bf16.xpose.msra.mxu0 0
    %427 = vmatprep.subr.bf16.mxu0 0
    %428 = vmatpush1.bf16.xpose.msra.mxu0 0
    %429 = vmatprep.subr.bf16.mxu0 0
    %430 = vmatpush1.bf16.xpose.msra.mxu0 0
    %431 = vmatprep.subr.bf16.mxu0 0
    %432 = vmatpush1.bf16.xpose.msra.mxu0 0
    %433 = vmatprep.mubr.bf16.mxu0 0
    %434 = vmatmul.mubr.bf16.gmra.mrb[0].mxu0 %v396
    %v435 = vpop.f32.mrb[0].mxu0
    %v436 = vadd.f32 0.0, %v435
    %v437 = vpop.f32.mrb[0].mxu0
    %v438 = vpop.f32.mrb[0].mxu0
    %v439 = vpop.f32.mrb[0].mxu0
    %440 = vdwg.mxu0
    %442 = vrot.lane.b32.xlu0 %v164, 64
    %v443 = vpop.permute.xlu0 %442
    %v445 = vsel %vm198, %v164, 0
    %v448 = vsel %vm198, %v443, 0
    %450 = vmatprep.subr.bf16.mxu0 0
    %451 = vmatpush1.bf16.xpose.msra.mxu0 %v448
    %452 = vmatprep.subr.bf16.mxu0 0
    %453 = vmatpush1.bf16.xpose.msra.mxu0 0
    %454 = vmatprep.subr.bf16.mxu0 0
    %455 = vmatpush1.bf16.xpose.msra.mxu0 0
    %456 = vmatprep.subr.bf16.mxu0 0
    %457 = vmatpush1.bf16.xpose.msra.mxu0 0
    %458 = vmatprep.subr.bf16.mxu0 0
    %459 = vmatpush1.bf16.xpose.msra.mxu0 0
    %460 = vmatprep.subr.bf16.mxu0 0
    %461 = vmatpush1.bf16.xpose.msra.mxu0 0
    %462 = vmatprep.subr.bf16.mxu0 0
    %463 = vmatpush1.bf16.xpose.msra.mxu0 0
    %464 = vmatprep.subr.bf16.mxu0 0
    %465 = vmatpush1.bf16.xpose.msra.mxu0 0
    %466 = vmatprep.subr.bf16.mxu0 0
    %467 = vmatpush1.bf16.xpose.msra.mxu0 0
    %468 = vmatprep.subr.bf16.mxu0 0
    %469 = vmatpush1.bf16.xpose.msra.mxu0 0
    %470 = vmatprep.subr.bf16.mxu0 0
    %471 = vmatpush1.bf16.xpose.msra.mxu0 0
    %472 = vmatprep.subr.bf16.mxu0 0
    %473 = vmatpush1.bf16.xpose.msra.mxu0 0
    %474 = vmatprep.subr.bf16.mxu0 0
    %475 = vmatpush1.bf16.xpose.msra.mxu0 0
    %476 = vmatprep.subr.bf16.mxu0 0
    %477 = vmatpush1.bf16.xpose.msra.mxu0 0
    %478 = vmatprep.subr.bf16.mxu0 0
    %479 = vmatpush1.bf16.xpose.msra.mxu0 0
    %480 = vmatprep.subr.bf16.mxu0 0
    %481 = vmatpush1.bf16.xpose.msra.mxu0 0
    %482 = vmatprep.mubr.bf16.mxu0 0
    %483 = vmatmul.mubr.bf16.gmra.mrb[0].mxu0 %v445
    %v484 = vpop.f32.mrb[0].mxu0
    %v485 = vadd.f32 0.0, %v484
    %v486 = vpop.f32.mrb[0].mxu0
    %v487 = vpop.f32.mrb[0].mxu0
    %v488 = vpop.f32.mrb[0].mxu0
    %489 = vdwg.mxu0
    %491 = vrot.lane.b32.xlu0 %v165, 64
    %v492 = vpop.permute.xlu0 %491
    %v494 = vsel %vm198, %v165, 0
    %v497 = vsel %vm198, %v492, 0
    %499 = vmatprep.subr.bf16.mxu0 0
    %500 = vmatpush1.bf16.xpose.msra.mxu0 %v497
    %501 = vmatprep.subr.bf16.mxu0 0
    %502 = vmatpush1.bf16.xpose.msra.mxu0 0
    %503 = vmatprep.subr.bf16.mxu0 0
    %504 = vmatpush1.bf16.xpose.msra.mxu0 0
    %505 = vmatprep.subr.bf16.mxu0 0
    %506 = vmatpush1.bf16.xpose.msra.mxu0 0
    %507 = vmatprep.subr.bf16.mxu0 0
    %508 = vmatpush1.bf16.xpose.msra.mxu0 0
    %509 = vmatprep.subr.bf16.mxu0 0
    %510 = vmatpush1.bf16.xpose.msra.mxu0 0
    %511 = vmatprep.subr.bf16.mxu0 0
    %512 = vmatpush1.bf16.xpose.msra.mxu0 0
    %513 = vmatprep.subr.bf16.mxu0 0
    %514 = vmatpush1.bf16.xpose.msra.mxu0 0
    %515 = vmatprep.subr.bf16.mxu0 0
    %516 = vmatpush1.bf16.xpose.msra.mxu0 0
    %517 = vmatprep.subr.bf16.mxu0 0
    %518 = vmatpush1.bf16.xpose.msra.mxu0 0
    %519 = vmatprep.subr.bf16.mxu0 0
    %520 = vmatpush1.bf16.xpose.msra.mxu0 0
    %521 = vmatprep.subr.bf16.mxu0 0
    %522 = vmatpush1.bf16.xpose.msra.mxu0 0
    %523 = vmatprep.subr.bf16.mxu0 0
    %524 = vmatpush1.bf16.xpose.msra.mxu0 0
    %525 = vmatprep.subr.bf16.mxu0 0
    %526 = vmatpush1.bf16.xpose.msra.mxu0 0
    %527 = vmatprep.subr.bf16.mxu0 0
    %528 = vmatpush1.bf16.xpose.msra.mxu0 0
    %529 = vmatprep.subr.bf16.mxu0 0
    %530 = vmatpush1.bf16.xpose.msra.mxu0 0
    %531 = vmatprep.mubr.bf16.mxu0 0
    %532 = vmatmul.mubr.bf16.gmra.mrb[0].mxu0 %v494
    %v533 = vpop.f32.mrb[0].mxu0
    %v534 = vadd.f32 0.0, %v533
    %v535 = vpop.f32.mrb[0].mxu0
    %v536 = vpop.f32.mrb[0].mxu0
    %v537 = vpop.f32.mrb[0].mxu0
    %538 = vdwg.mxu0
    %540 = vrot.lane.b32.xlu0 %v166, 64
    %v541 = vpop.permute.xlu0 %540
    %v543 = vsel %vm198, %v166, 0
    %v546 = vsel %vm198, %v541, 0
    %548 = vmatprep.subr.bf16.mxu0 0
    %549 = vmatpush1.bf16.xpose.msra.mxu0 %v546
    %550 = vmatprep.subr.bf16.mxu0 0
    %551 = vmatpush1.bf16.xpose.msra.mxu0 0
    %552 = vmatprep.subr.bf16.mxu0 0
    %553 = vmatpush1.bf16.xpose.msra.mxu0 0
    %554 = vmatprep.subr.bf16.mxu0 0
    %555 = vmatpush1.bf16.xpose.msra.mxu0 0
    %556 = vmatprep.subr.bf16.mxu0 0
    %557 = vmatpush1.bf16.xpose.msra.mxu0 0
    %558 = vmatprep.subr.bf16.mxu0 0
    %559 = vmatpush1.bf16.xpose.msra.mxu0 0
    %560 = vmatprep.subr.bf16.mxu0 0
    %561 = vmatpush1.bf16.xpose.msra.mxu0 0
    %562 = vmatprep.subr.bf16.mxu0 0
    %563 = vmatpush1.bf16.xpose.msra.mxu0 0
    %564 = vmatprep.subr.bf16.mxu0 0
    %565 = vmatpush1.bf16.xpose.msra.mxu0 0
    %566 = vmatprep.subr.bf16.mxu0 0
    %567 = vmatpush1.bf16.xpose.msra.mxu0 0
    %568 = vmatprep.subr.bf16.mxu0 0
    %569 = vmatpush1.bf16.xpose.msra.mxu0 0
    %570 = vmatprep.subr.bf16.mxu0 0
    %571 = vmatpush1.bf16.xpose.msra.mxu0 0
    %572 = vmatprep.subr.bf16.mxu0 0
    %573 = vmatpush1.bf16.xpose.msra.mxu0 0
    %574 = vmatprep.subr.bf16.mxu0 0
    %575 = vmatpush1.bf16.xpose.msra.mxu0 0
    %576 = vmatprep.subr.bf16.mxu0 0
    %577 = vmatpush1.bf16.xpose.msra.mxu0 0
    %578 = vmatprep.subr.bf16.mxu0 0
    %579 = vmatpush1.bf16.xpose.msra.mxu0 0
    %580 = vmatprep.mubr.bf16.mxu0 0
    %581 = vmatmul.mubr.bf16.gmra.mrb[0].mxu0 %v543
    %v582 = vpop.f32.mrb[0].mxu0
    %v583 = vadd.f32 0.0, %v582
    %v584 = vpop.f32.mrb[0].mxu0
    %v585 = vpop.f32.mrb[0].mxu0
    %v586 = vpop.f32.mrb[0].mxu0
    %587 = vdwg.mxu0
    %vm588 = vcmask 64512
    %v589 = vsel %vm588, %v240, -inf
    %590 = vmax.xlane.f32.xlu0 %v589
    %v591 = vpop.xlane.xlu0 %590
    %v592 = vsel %vm588, %v289, -inf
    %593 = vmax.xlane.f32.xlu0 %v592
    %v594 = vpop.xlane.xlu0 %593
    %v595 = vsel %vm588, %v338, -inf
    %596 = vmax.xlane.f32.xlu0 %v595
    %v597 = vpop.xlane.xlu0 %596
    %v598 = vsel %vm588, %v387, -inf
    %599 = vmax.xlane.f32.xlu0 %v598
    %v600 = vpop.xlane.xlu0 %599
    %v601 = vsel %vm588, %v436, -inf
    %602 = vmax.xlane.f32.xlu0 %v601
    %v603 = vpop.xlane.xlu0 %602
    %v604 = vsel %vm588, %v485, -inf
    %605 = vmax.xlane.f32.xlu0 %v604
    %v606 = vpop.xlane.xlu0 %605
    %v607 = vsel %vm588, %v534, -inf
    %608 = vmax.xlane.f32.xlu0 %v607
    %v609 = vpop.xlane.xlu0 %608
    %v610 = vsel %vm588, %v583, -inf
    %611 = vmax.xlane.f32.xlu0 %v610
    %v612 = vpop.xlane.xlu0 %611
    %v613 = vsub.f32 %v240, %v591
    %v614 = vsub.f32 %v289, %v594
    %v615 = vsub.f32 %v338, %v597
    %v616 = vsub.f32 %v387, %v600
    %v617 = vsub.f32 %v436, %v603
    %v618 = vsub.f32 %v485, %v606
    %v619 = vsub.f32 %v534, %v609
    %v620 = vsub.f32 %v583, %v612
    %v621 = vmul.f32 %v613, 1.442695
    %v622 = vpow.pop %v621
    %v623 = vmul.f32 %v614, 1.442695
    %v624 = vpow.pop %v623
    %v625 = vmul.f32 %v615, 1.442695
    %v626 = vpow.pop %v625
    %v627 = vmul.f32 %v616, 1.442695
    %v628 = vpow.pop %v627
    %v629 = vmul.f32 %v617, 1.442695
    %v630 = vpow.pop %v629
    %v631 = vmul.f32 %v618, 1.442695
    %v632 = vpow.pop %v631
    %v633 = vmul.f32 %v619, 1.442695
    %v634 = vpow.pop %v633
    %v635 = vmul.f32 %v620, 1.442695
    %v636 = vpow.pop %v635
    %v637 = vsel %vm588, %v622, 0.0
    %638 = vadd.xlane.f32.xlu0 %v637
    %v639 = vpop.xlane.xlu0 %638
    %v640 = vsel %vm588, %v624, 0.0
    %641 = vadd.xlane.f32.xlu0 %v640
    %v642 = vpop.xlane.xlu0 %641
    %v643 = vsel %vm588, %v626, 0.0
    %644 = vadd.xlane.f32.xlu0 %v643
    %v645 = vpop.xlane.xlu0 %644
    %v646 = vsel %vm588, %v628, 0.0
    %647 = vadd.xlane.f32.xlu0 %v646
    %v648 = vpop.xlane.xlu0 %647
    %v649 = vsel %vm588, %v630, 0.0
    %650 = vadd.xlane.f32.xlu0 %v649
    %v651 = vpop.xlane.xlu0 %650
    %v652 = vsel %vm588, %v632, 0.0
    %653 = vadd.xlane.f32.xlu0 %v652
    %v654 = vpop.xlane.xlu0 %653
    %v655 = vsel %vm588, %v634, 0.0
    %656 = vadd.xlane.f32.xlu0 %v655
    %v657 = vpop.xlane.xlu0 %656
    %v658 = vsel %vm588, %v636, 0.0
    %659 = vadd.xlane.f32.xlu0 %v658
    %v660 = vpop.xlane.xlu0 %659
    %v661 = vrcp.pop %v639
    %v662 = vrcp.pop %v642
    %v663 = vrcp.pop %v645
    %v664 = vrcp.pop %v648
    %v665 = vrcp.pop %v651
    %v666 = vrcp.pop %v654
    %v667 = vrcp.pop %v657
    %v668 = vrcp.pop %v660
    %v669 = vmul.f32 %v622, %v661
    %v670 = vmul.f32 %v624, %v662
    %v671 = vmul.f32 %v626, %v663
    %v672 = vmul.f32 %v628, %v664
    %v673 = vmul.f32 %v630, %v665
    %v674 = vmul.f32 %v632, %v666
    %v675 = vmul.f32 %v634, %v667
    %v676 = vmul.f32 %v636, %v668
    %v677 = vpack.c.bf16 %v669, %v669
    %v678 = vpack.c.bf16 %v670, %v670
    %v679 = vpack.c.bf16 %v671, %v671
    %v680 = vpack.c.bf16 %v672, %v672
    %v681 = vpack.c.bf16 %v673, %v673
    %v682 = vpack.c.bf16 %v674, %v674
    %v683 = vpack.c.bf16 %v675, %v675
    %v684 = vpack.c.bf16 %v676, %v676
    %v686 = vsel %vm588, %v677, 0
    %vm688 = vcmask 1043456
    %v690 = vsel %vm688, %v187, 0
    %692 = vmatprep.subr.bf16.mxu0 0
    %693 = vmatpush1.bf16.msra.mxu0 %v690
    %694 = vmatprep.subr.bf16.mxu0 0
    %695 = vmatpush1.bf16.msra.mxu0 0
    %696 = vmatprep.subr.bf16.mxu0 0
    %697 = vmatpush1.bf16.msra.mxu0 0
    %698 = vmatprep.subr.bf16.mxu0 0
    %699 = vmatpush1.bf16.msra.mxu0 0
    %700 = vmatprep.subr.bf16.mxu0 0
    %701 = vmatpush1.bf16.msra.mxu0 0
    %702 = vmatprep.subr.bf16.mxu0 0
    %703 = vmatpush1.bf16.msra.mxu0 0
    %704 = vmatprep.subr.bf16.mxu0 0
    %705 = vmatpush1.bf16.msra.mxu0 0
    %706 = vmatprep.subr.bf16.mxu0 0
    %707 = vmatpush1.bf16.msra.mxu0 0
    %708 = vmatprep.subr.bf16.mxu0 0
    %709 = vmatpush1.bf16.msra.mxu0 0
    %710 = vmatprep.subr.bf16.mxu0 0
    %711 = vmatpush1.bf16.msra.mxu0 0
    %712 = vmatprep.subr.bf16.mxu0 0
    %713 = vmatpush1.bf16.msra.mxu0 0
    %714 = vmatprep.subr.bf16.mxu0 0
    %715 = vmatpush1.bf16.msra.mxu0 0
    %716 = vmatprep.subr.bf16.mxu0 0
    %717 = vmatpush1.bf16.msra.mxu0 0
    %718 = vmatprep.subr.bf16.mxu0 0
    %719 = vmatpush1.bf16.msra.mxu0 0
    %720 = vmatprep.subr.bf16.mxu0 0
    %721 = vmatpush1.bf16.msra.mxu0 0
    %722 = vmatprep.subr.bf16.mxu0 0
    %723 = vmatpush1.bf16.msra.mxu0 0
    %724 = vmatprep.mubr.bf16.mxu0 0
    %725 = vmatmul.mubr.bf16.gmra.mrb[0].mxu0 %v686
    %v726 = vpop.f32.mrb[0].mxu0
    %v727 = vadd.f32 0.0, %v726
    %v728 = vpop.f32.mrb[0].mxu0
    %v729 = vpop.f32.mrb[0].mxu0
    %v730 = vpop.f32.mrb[0].mxu0
    %731 = vdwg.mxu0
    %v733 = vsel %vm588, %v678, 0
    %v736 = vsel %vm688, %v188, 0
    %738 = vmatprep.subr.bf16.mxu0 0
    %739 = vmatpush1.bf16.msra.mxu0 %v736
    %740 = vmatprep.subr.bf16.mxu0 0
    %741 = vmatpush1.bf16.msra.mxu0 0
    %742 = vmatprep.subr.bf16.mxu0 0
    %743 = vmatpush1.bf16.msra.mxu0 0
    %744 = vmatprep.subr.bf16.mxu0 0
    %745 = vmatpush1.bf16.msra.mxu0 0
    %746 = vmatprep.subr.bf16.mxu0 0
    %747 = vmatpush1.bf16.msra.mxu0 0
    %748 = vmatprep.subr.bf16.mxu0 0
    %749 = vmatpush1.bf16.msra.mxu0 0
    %750 = vmatprep.subr.bf16.mxu0 0
    %751 = vmatpush1.bf16.msra.mxu0 0
    %752 = vmatprep.subr.bf16.mxu0 0
    %753 = vmatpush1.bf16.msra.mxu0 0
    %754 = vmatprep.subr.bf16.mxu0 0
    %755 = vmatpush1.bf16.msra.mxu0 0
    %756 = vmatprep.subr.bf16.mxu0 0
    %757 = vmatpush1.bf16.msra.mxu0 0
    %758 = vmatprep.subr.bf16.mxu0 0
    %759 = vmatpush1.bf16.msra.mxu0 0
    %760 = vmatprep.subr.bf16.mxu0 0
    %761 = vmatpush1.bf16.msra.mxu0 0
    %762 = vmatprep.subr.bf16.mxu0 0
    %763 = vmatpush1.bf16.msra.mxu0 0
    %764 = vmatprep.subr.bf16.mxu0 0
    %765 = vmatpush1.bf16.msra.mxu0 0
    %766 = vmatprep.subr.bf16.mxu0 0
    %767 = vmatpush1.bf16.msra.mxu0 0
    %768 = vmatprep.subr.bf16.mxu0 0
    %769 = vmatpush1.bf16.msra.mxu0 0
    %770 = vmatprep.mubr.bf16.mxu0 0
    %771 = vmatmul.mubr.bf16.gmra.mrb[0].mxu0 %v733
    %v772 = vpop.f32.mrb[0].mxu0
    %v773 = vadd.f32 0.0, %v772
    %v774 = vpop.f32.mrb[0].mxu0
    %v775 = vpop.f32.mrb[0].mxu0
    %v776 = vpop.f32.mrb[0].mxu0
    %777 = vdwg.mxu0
    %v779 = vsel %vm588, %v679, 0
    %v782 = vsel %vm688, %v189, 0
    %784 = vmatprep.subr.bf16.mxu0 0
    %785 = vmatpush1.bf16.msra.mxu0 %v782
    %786 = vmatprep.subr.bf16.mxu0 0
    %787 = vmatpush1.bf16.msra.mxu0 0
    %788 = vmatprep.subr.bf16.mxu0 0
    %789 = vmatpush1.bf16.msra.mxu0 0
    %790 = vmatprep.subr.bf16.mxu0 0
    %791 = vmatpush1.bf16.msra.mxu0 0
    %792 = vmatprep.subr.bf16.mxu0 0
    %793 = vmatpush1.bf16.msra.mxu0 0
    %794 = vmatprep.subr.bf16.mxu0 0
    %795 = vmatpush1.bf16.msra.mxu0 0
    %796 = vmatprep.subr.bf16.mxu0 0
    %797 = vmatpush1.bf16.msra.mxu0 0
    %798 = vmatprep.subr.bf16.mxu0 0
    %799 = vmatpush1.bf16.msra.mxu0 0
    %800 = vmatprep.subr.bf16.mxu0 0
    %801 = vmatpush1.bf16.msra.mxu0 0
    %802 = vmatprep.subr.bf16.mxu0 0
    %803 = vmatpush1.bf16.msra.mxu0 0
    %804 = vmatprep.subr.bf16.mxu0 0
    %805 = vmatpush1.bf16.msra.mxu0 0
    %806 = vmatprep.subr.bf16.mxu0 0
    %807 = vmatpush1.bf16.msra.mxu0 0
    %808 = vmatprep.subr.bf16.mxu0 0
    %809 = vmatpush1.bf16.msra.mxu0 0
    %810 = vmatprep.subr.bf16.mxu0 0
    %811 = vmatpush1.bf16.msra.mxu0 0
    %812 = vmatprep.subr.bf16.mxu0 0
    %813 = vmatpush1.bf16.msra.mxu0 0
    %814 = vmatprep.subr.bf16.mxu0 0
    %815 = vmatpush1.bf16.msra.mxu0 0
    %816 = vmatprep.mubr.bf16.mxu0 0
    %817 = vmatmul.mubr.bf16.gmra.mrb[0].mxu0 %v779
    %v818 = vpop.f32.mrb[0].mxu0
    %v819 = vadd.f32 0.0, %v818
    %v820 = vpop.f32.mrb[0].mxu0
    %v821 = vpop.f32.mrb[0].mxu0
    %v822 = vpop.f32.mrb[0].mxu0
    %823 = vdwg.mxu0
    %v825 = vsel %vm588, %v680, 0
    %v828 = vsel %vm688, %v190, 0
    %830 = vmatprep.subr.bf16.mxu0 0
    %831 = vmatpush1.bf16.msra.mxu0 %v828
    %832 = vmatprep.subr.bf16.mxu0 0
    %833 = vmatpush1.bf16.msra.mxu0 0
    %834 = vmatprep.subr.bf16.mxu0 0
    %835 = vmatpush1.bf16.msra.mxu0 0
    %836 = vmatprep.subr.bf16.mxu0 0
    %837 = vmatpush1.bf16.msra.mxu0 0
    %838 = vmatprep.subr.bf16.mxu0 0
    %839 = vmatpush1.bf16.msra.mxu0 0
    %840 = vmatprep.subr.bf16.mxu0 0
    %841 = vmatpush1.bf16.msra.mxu0 0
    %842 = vmatprep.subr.bf16.mxu0 0
    %843 = vmatpush1.bf16.msra.mxu0 0
    %844 = vmatprep.subr.bf16.mxu0 0
    %845 = vmatpush1.bf16.msra.mxu0 0
    %846 = vmatprep.subr.bf16.mxu0 0
    %847 = vmatpush1.bf16.msra.mxu0 0
    %848 = vmatprep.subr.bf16.mxu0 0
    %849 = vmatpush1.bf16.msra.mxu0 0
    %850 = vmatprep.subr.bf16.mxu0 0
    %851 = vmatpush1.bf16.msra.mxu0 0
    %852 = vmatprep.subr.bf16.mxu0 0
    %853 = vmatpush1.bf16.msra.mxu0 0
    %854 = vmatprep.subr.bf16.mxu0 0
    %855 = vmatpush1.bf16.msra.mxu0 0
    %856 = vmatprep.subr.bf16.mxu0 0
    %857 = vmatpush1.bf16.msra.mxu0 0
    %858 = vmatprep.subr.bf16.mxu0 0
    %859 = vmatpush1.bf16.msra.mxu0 0
    %860 = vmatprep.subr.bf16.mxu0 0
    %861 = vmatpush1.bf16.msra.mxu0 0
    %862 = vmatprep.mubr.bf16.mxu0 0
    %863 = vmatmul.mubr.bf16.gmra.mrb[0].mxu0 %v825
    %v864 = vpop.f32.mrb[0].mxu0
    %v865 = vadd.f32 0.0, %v864
    %v866 = vpop.f32.mrb[0].mxu0
    %v867 = vpop.f32.mrb[0].mxu0
    %v868 = vpop.f32.mrb[0].mxu0
    %869 = vdwg.mxu0
    %v871 = vsel %vm588, %v681, 0
    %v874 = vsel %vm688, %v191, 0
    %876 = vmatprep.subr.bf16.mxu0 0
    %877 = vmatpush1.bf16.msra.mxu0 %v874
    %878 = vmatprep.subr.bf16.mxu0 0
    %879 = vmatpush1.bf16.msra.mxu0 0
    %880 = vmatprep.subr.bf16.mxu0 0
    %881 = vmatpush1.bf16.msra.mxu0 0
    %882 = vmatprep.subr.bf16.mxu0 0
    %883 = vmatpush1.bf16.msra.mxu0 0
    %884 = vmatprep.subr.bf16.mxu0 0
    %885 = vmatpush1.bf16.msra.mxu0 0
    %886 = vmatprep.subr.bf16.mxu0 0
    %887 = vmatpush1.bf16.msra.mxu0 0
    %888 = vmatprep.subr.bf16.mxu0 0
    %889 = vmatpush1.bf16.msra.mxu0 0
    %890 = vmatprep.subr.bf16.mxu0 0
    %891 = vmatpush1.bf16.msra.mxu0 0
    %892 = vmatprep.subr.bf16.mxu0 0
    %893 = vmatpush1.bf16.msra.mxu0 0
    %894 = vmatprep.subr.bf16.mxu0 0
    %895 = vmatpush1.bf16.msra.mxu0 0
    %896 = vmatprep.subr.bf16.mxu0 0
    %897 = vmatpush1.bf16.msra.mxu0 0
    %898 = vmatprep.subr.bf16.mxu0 0
    %899 = vmatpush1.bf16.msra.mxu0 0
    %900 = vmatprep.subr.bf16.mxu0 0
    %901 = vmatpush1.bf16.msra.mxu0 0
    %902 = vmatprep.subr.bf16.mxu0 0
    %903 = vmatpush1.bf16.msra.mxu0 0
    %904 = vmatprep.subr.bf16.mxu0 0
    %905 = vmatpush1.bf16.msra.mxu0 0
    %906 = vmatprep.subr.bf16.mxu0 0
    %907 = vmatpush1.bf16.msra.mxu0 0
    %908 = vmatprep.mubr.bf16.mxu0 0
    %909 = vmatmul.mubr.bf16.gmra.mrb[0].mxu0 %v871
    %v910 = vpop.f32.mrb[0].mxu0
    %v911 = vadd.f32 0.0, %v910
    %v912 = vpop.f32.mrb[0].mxu0
    %v913 = vpop.f32.mrb[0].mxu0
    %v914 = vpop.f32.mrb[0].mxu0
    %915 = vdwg.mxu0
    %v917 = vsel %vm588, %v682, 0
    %v920 = vsel %vm688, %v192, 0
    %922 = vmatprep.subr.bf16.mxu0 0
    %923 = vmatpush1.bf16.msra.mxu0 %v920
    %924 = vmatprep.subr.bf16.mxu0 0
    %925 = vmatpush1.bf16.msra.mxu0 0
    %926 = vmatprep.subr.bf16.mxu0 0
    %927 = vmatpush1.bf16.msra.mxu0 0
    %928 = vmatprep.subr.bf16.mxu0 0
    %929 = vmatpush1.bf16.msra.mxu0 0
    %930 = vmatprep.subr.bf16.mxu0 0
    %931 = vmatpush1.bf16.msra.mxu0 0
    %932 = vmatprep.subr.bf16.mxu0 0
    %933 = vmatpush1.bf16.msra.mxu0 0
    %934 = vmatprep.subr.bf16.mxu0 0
    %935 = vmatpush1.bf16.msra.mxu0 0
    %936 = vmatprep.subr.bf16.mxu0 0
    %937 = vmatpush1.bf16.msra.mxu0 0
    %938 = vmatprep.subr.bf16.mxu0 0
    %939 = vmatpush1.bf16.msra.mxu0 0
    %940 = vmatprep.subr.bf16.mxu0 0
    %941 = vmatpush1.bf16.msra.mxu0 0
    %942 = vmatprep.subr.bf16.mxu0 0
    %943 = vmatpush1.bf16.msra.mxu0 0
    %944 = vmatprep.subr.bf16.mxu0 0
    %945 = vmatpush1.bf16.msra.mxu0 0
    %946 = vmatprep.subr.bf16.mxu0 0
    %947 = vmatpush1.bf16.msra.mxu0 0
    %948 = vmatprep.subr.bf16.mxu0 0
    %949 = vmatpush1.bf16.msra.mxu0 0
    %950 = vmatprep.subr.bf16.mxu0 0
    %951 = vmatpush1.bf16.msra.mxu0 0
    %952 = vmatprep.subr.bf16.mxu0 0
    %953 = vmatpush1.bf16.msra.mxu0 0
    %954 = vmatprep.mubr.bf16.mxu0 0
    %955 = vmatmul.mubr.bf16.gmra.mrb[0].mxu0 %v917
    %v956 = vpop.f32.mrb[0].mxu0
    %v957 = vadd.f32 0.0, %v956
    %v958 = vpop.f32.mrb[0].mxu0
    %v959 = vpop.f32.mrb[0].mxu0
    %v960 = vpop.f32.mrb[0].mxu0
    %961 = vdwg.mxu0
    %v963 = vsel %vm588, %v683, 0
    %v966 = vsel %vm688, %v193, 0
    %968 = vmatprep.subr.bf16.mxu0 0
    %969 = vmatpush1.bf16.msra.mxu0 %v966
    %970 = vmatprep.subr.bf16.mxu0 0
    %971 = vmatpush1.bf16.msra.mxu0 0
    %972 = vmatprep.subr.bf16.mxu0 0
    %973 = vmatpush1.bf16.msra.mxu0 0
    %974 = vmatprep.subr.bf16.mxu0 0
    %975 = vmatpush1.bf16.msra.mxu0 0
    %976 = vmatprep.subr.bf16.mxu0 0
    %977 = vmatpush1.bf16.msra.mxu0 0
    %978 = vmatprep.subr.bf16.mxu0 0
    %979 = vmatpush1.bf16.msra.mxu0 0
    %980 = vmatprep.subr.bf16.mxu0 0
    %981 = vmatpush1.bf16.msra.mxu0 0
    %982 = vmatprep.subr.bf16.mxu0 0
    %983 = vmatpush1.bf16.msra.mxu0 0
    %984 = vmatprep.subr.bf16.mxu0 0
    %985 = vmatpush1.bf16.msra.mxu0 0
    %986 = vmatprep.subr.bf16.mxu0 0
    %987 = vmatpush1.bf16.msra.mxu0 0
    %988 = vmatprep.subr.bf16.mxu0 0
    %989 = vmatpush1.bf16.msra.mxu0 0
    %990 = vmatprep.subr.bf16.mxu0 0
    %991 = vmatpush1.bf16.msra.mxu0 0
    %992 = vmatprep.subr.bf16.mxu0 0
    %993 = vmatpush1.bf16.msra.mxu0 0
    %994 = vmatprep.subr.bf16.mxu0 0
    %995 = vmatpush1.bf16.msra.mxu0 0
    %996 = vmatprep.subr.bf16.mxu0 0
    %997 = vmatpush1.bf16.msra.mxu0 0
    %998 = vmatprep.subr.bf16.mxu0 0
    %999 = vmatpush1.bf16.msra.mxu0 0
    %1000 = vmatprep.mubr.bf16.mxu0 0
    %1001 = vmatmul.mubr.bf16.gmra.mrb[0].mxu0 %v963
    %v1002 = vpop.f32.mrb[0].mxu0
    %v1003 = vadd.f32 0.0, %v1002
    %v1004 = vpop.f32.mrb[0].mxu0
    %v1005 = vpop.f32.mrb[0].mxu0
    %v1006 = vpop.f32.mrb[0].mxu0
    %1007 = vdwg.mxu0
    %v1009 = vsel %vm588, %v684, 0
    %v1012 = vsel %vm688, %v194, 0
    %1014 = vmatprep.subr.bf16.mxu0 0
    %1015 = vmatpush1.bf16.msra.mxu0 %v1012
    %1016 = vmatprep.subr.bf16.mxu0 0
    %1017 = vmatpush1.bf16.msra.mxu0 0
    %1018 = vmatprep.subr.bf16.mxu0 0
    %1019 = vmatpush1.bf16.msra.mxu0 0
    %1020 = vmatprep.subr.bf16.mxu0 0
    %1021 = vmatpush1.bf16.msra.mxu0 0
    %1022 = vmatprep.subr.bf16.mxu0 0
    %1023 = vmatpush1.bf16.msra.mxu0 0
    %1024 = vmatprep.subr.bf16.mxu0 0
    %1025 = vmatpush1.bf16.msra.mxu0 0
    %1026 = vmatprep.subr.bf16.mxu0 0
    %1027 = vmatpush1.bf16.msra.mxu0 0
    %1028 = vmatprep.subr.bf16.mxu0 0
    %1029 = vmatpush1.bf16.msra.mxu0 0
    %1030 = vmatprep.subr.bf16.mxu0 0
    %1031 = vmatpush1.bf16.msra.mxu0 0
    %1032 = vmatprep.subr.bf16.mxu0 0
    %1033 = vmatpush1.bf16.msra.mxu0 0
    %1034 = vmatprep.subr.bf16.mxu0 0
    %1035 = vmatpush1.bf16.msra.mxu0 0
    %1036 = vmatprep.subr.bf16.mxu0 0
    %1037 = vmatpush1.bf16.msra.mxu0 0
    %1038 = vmatprep.subr.bf16.mxu0 0
    %1039 = vmatpush1.bf16.msra.mxu0 0
    %1040 = vmatprep.subr.bf16.mxu0 0
    %1041 = vmatpush1.bf16.msra.mxu0 0
    %1042 = vmatprep.subr.bf16.mxu0 0
    %1043 = vmatpush1.bf16.msra.mxu0 0
    %1044 = vmatprep.subr.bf16.mxu0 0
    %1045 = vmatpush1.bf16.msra.mxu0 0
    %1046 = vmatprep.mubr.bf16.mxu0 0
    %1047 = vmatmul.mubr.bf16.gmra.mrb[0].mxu0 %v1009
    %v1048 = vpop.f32.mrb[0].mxu0
    %v1049 = vadd.f32 0.0, %v1048
    %v1050 = vpop.f32.mrb[0].mxu0
    %v1051 = vpop.f32.mrb[0].mxu0
    %v1052 = vpop.f32.mrb[0].mxu0
    %1053 = vdwg.mxu0
    %1056 = vrot.lane.b32.xlu0 %v819, 16
    %v1057 = vpop.permute.xlu0 %1056
    %1058 = vrot.lane.b32.xlu0 %v865, 16
    %v1059 = vpop.permute.xlu0 %1058
    %1064 = vrot.lane.b32.xlu0 %v911, 32
    %v1065 = vpop.permute.xlu0 %1064
    %1066 = vrot.lane.b32.xlu0 %v957, 32
    %v1067 = vpop.permute.xlu0 %1066
    %1072 = vrot.lane.b32.xlu0 %v1003, 48
    %v1073 = vpop.permute.xlu0 %1072
    %1074 = vrot.lane.b32.xlu0 %v1049, 48
    %v1075 = vpop.permute.xlu0 %1074
    %v1078 = vsel %vm198, %v727, %v1057
    %v1079 = vsel %vm198, %v773, %v1059
    %v1080 = vsel %vm92, %v1078, %v1065
    %v1081 = vsel %vm92, %v1079, %v1067
    %vm1082 = vcmask 392192
    %v1083 = vsel %vm1082, %v1080, %v1073
    %v1084 = vsel %vm1082, %v1081, %v1075
    %v1085 = vld [vmem:[#allocation5 + $0x20] sm:$0xf]
    %v1086 = vld [vmem:[#allocation5 + $0x28] sm:$0xf]
    %v1087 = vld [vmem:[#allocation5 + $0x30] sm:$0xf]
    %v1088 = vld [vmem:[#allocation5 + $0x38] sm:$0xf]
    %v1089 = vld [vmem:[#allocation5 + $0x40] sm:$0xf]
    %v1090 = vld [vmem:[#allocation5 + $0x48] sm:$0xf]
    %v1091 = vld [vmem:[#allocation5 + $0x50] sm:$0xf]
    %v1092 = vld [vmem:[#allocation5 + $0x58] sm:$0xf]
    %v1093 = vpack.c.bf16 %v1084, %v1083
    %v1094 = vlaneseq
    %v1095 = vshrl.u32 %v1094, 7
    %v1096 = vsub.s32 1, %v1095
    %v1097 = vrot.slane %v58, %v1096
    %v1106 = vunpack.c.l.b16 %v1085
    %v1107 = vunpack.c.l.b16 %v1086
    %v1108 = vunpack.c.l.b16 %v1087
    %v1109 = vunpack.c.l.b16 %v1088
    %v1110 = vunpack.c.l.b16 %v1089
    %v1111 = vunpack.c.l.b16 %v1090
    %v1112 = vunpack.c.l.b16 %v1091
    %v1113 = vunpack.c.l.b16 %v1092
    %v1114 = vpack.c.b16 %v1107, %v1106
    %v1115 = vpack.c.b16 %v1109, %v1108
    %v1116 = vpack.c.b16 %v1111, %v1110
    %v1117 = vpack.c.b16 %v1113, %v1112
    %vm1122 = vcmask 523264
    %v1124 = vsel %vm1122, %v1093, 0
    %1126 = vmatprep.subr.bf16.mxu0 0
    %1127 = vmatpush1.bf16.msra.mxu0 %v1114
    %1128 = vmatprep.subr.bf16.mxu0 0
    %1129 = vmatpush1.bf16.msra.mxu0 %v1115
    %1130 = vmatprep.subr.bf16.mxu0 0
    %1131 = vmatpush1.bf16.msra.mxu0 %v1116
    %1132 = vmatprep.subr.bf16.mxu0 0
    %1133 = vmatpush1.bf16.msra.mxu0 %v1117
    %1134 = vmatprep.subr.bf16.mxu0 0
    %1135 = vmatpush1.bf16.msra.mxu0 0
    %1136 = vmatprep.subr.bf16.mxu0 0
    %1137 = vmatpush1.bf16.msra.mxu0 0
    %1138 = vmatprep.subr.bf16.mxu0 0
    %1139 = vmatpush1.bf16.msra.mxu0 0
    %1140 = vmatprep.subr.bf16.mxu0 0
    %1141 = vmatpush1.bf16.msra.mxu0 0
    %1142 = vmatprep.subr.bf16.mxu0 0
    %1143 = vmatpush1.bf16.msra.mxu0 0
    %1144 = vmatprep.subr.bf16.mxu0 0
    %1145 = vmatpush1.bf16.msra.mxu0 0
    %1146 = vmatprep.subr.bf16.mxu0 0
    %1147 = vmatpush1.bf16.msra.mxu0 0
    %1148 = vmatprep.subr.bf16.mxu0 0
    %1149 = vmatpush1.bf16.msra.mxu0 0
    %1150 = vmatprep.subr.bf16.mxu0 0
    %1151 = vmatpush1.bf16.msra.mxu0 0
    %1152 = vmatprep.subr.bf16.mxu0 0
    %1153 = vmatpush1.bf16.msra.mxu0 0
    %1154 = vmatprep.subr.bf16.mxu0 0
    %1155 = vmatpush1.bf16.msra.mxu0 0
    %1156 = vmatprep.subr.bf16.mxu0 0
    %1157 = vmatpush1.bf16.msra.mxu0 0
    %1158 = vmatprep.mubr.bf16.mxu0 0
    %1159 = vmatmul.mubr.bf16.gmra.mrb[0].mxu0 %v1124
    %v1160 = vpop.f32.mrb[0].mxu0
    %v1161 = vadd.f32 %v1097, %v1160
    %v1162 = vpop.f32.mrb[0].mxu0
    %v1163 = vpop.f32.mrb[0].mxu0
    %v1164 = vadd.f32 %v1097, %v1163
    %v1165 = vpop.f32.mrb[0].mxu0
    %1166 = vdwg.mxu0
    %v1167 = vadd.f32 %v1161, %v55
    %v1168 = vadd.f32 %v1164, %v56
    %v1169 = vsel %vm92, %v1167, 0.0
    %1170 = vadd.xlane.f32.xlu0 %v1169
    %v1171 = vpop.xlane.xlu0 %1170
    %v1172 = vsel %vm92, %v1168, 0.0
    %1173 = vadd.xlane.f32.xlu0 %v1172
    %v1174 = vpop.xlane.xlu0 %1173
    %v1175 = vrcp.pop 32.0
    %v1176 = vmul.f32 %v1171, %v1175
    %v1177 = vmul.f32 %v1174, %v1175
    %v1178 = vsub.f32 %v1167, %v1176
    %v1179 = vsub.f32 %v1168, %v1177
    %v1180 = vmul.f32 %v1178, %v1178
    %v1181 = vmul.f32 %v1179, %v1179
    %v1182 = vsel %vm92, %v1180, 0.0
    %1183 = vadd.xlane.f32.xlu0 %v1182
    %v1184 = vpop.xlane.xlu0 %1183
    %v1185 = vsel %vm92, %v1181, 0.0
    %1186 = vadd.xlane.f32.xlu0 %v1185
    %v1187 = vpop.xlane.xlu0 %1186
    %v1188 = vmul.f32 %v1184, %v1175
    %v1189 = vmul.f32 %v1187, %v1175
    %v1190 = vadd.f32 %v1188, 1e-05
    %v1191 = vadd.f32 %v1189, 1e-05
    %v1192 = vrsqrt.pop %v1190
    %v1193 = vrsqrt.pop %v1191
    %v1194 = vmul.f32 %v1178, %v1192
    %v1195 = vmul.f32 %v1179, %v1193
    %v1196 = vlaneseq
    %v1197 = vshrl.u32 %v1196, 7
    %v1198 = vsub.s32 2, %v1197
    %v1199 = vrot.slane %v58, %v1198
    %v1200 = vmul.f32 %v1194, %v1199
    %v1201 = vmul.f32 %v1195, %v1199
    %v1202 = vlaneseq
    %v1203 = vshrl.u32 %v1202, 7
    %v1204 = vsub.s32 3, %v1203
    %v1205 = vrot.slane %v58, %v1204
    %v1206 = vadd.f32 %v1200, %v1205
    %v1207 = vadd.f32 %v1201, %v1205
    %v1208 = vld [vmem:[#allocation5 + $0x60] sm:$0xf]
    %v1209 = vld [vmem:[#allocation5 + $0x68] sm:$0xf]
    %v1210 = vld [vmem:[#allocation5 + $0x70] sm:$0xf]
    %v1211 = vld [vmem:[#allocation5 + $0x78] sm:$0xf]
    %v1212 = vld [vmem:[#allocation5 + $0x80] sm:$0xf]
    %v1213 = vld [vmem:[#allocation5 + $0x88] sm:$0xf]
    %v1214 = vld [vmem:[#allocation5 + $0x90] sm:$0xf]
    %v1215 = vld [vmem:[#allocation5 + $0x98] sm:$0xf]
    %v1216 = vpack.c.bf16 %v1207, %v1206
    %v1217 = vlaneseq
    %v1218 = vshrl.u32 %v1217, 7
    %v1219 = vsub.s32 4, %v1218
    %v1220 = vrot.slane %v58, %v1219
    %v1225 = vunpack.c.l.b16 %v1208
    %v1226 = vunpack.c.l.b16 %v1209
    %v1227 = vunpack.c.l.b16 %v1210
    %v1228 = vunpack.c.l.b16 %v1211
    %v1229 = vpack.c.b16 %v1226, %v1225
    %v1230 = vpack.c.b16 %v1228, %v1227
    %v1234 = vsel %vm92, %v1216, 0
    %1236 = vmatprep.subr.bf16.mxu0 0
    %1237 = vmatpush1.bf16.msra.mxu0 %v1229
    %1238 = vmatprep.subr.bf16.mxu0 0
    %1239 = vmatpush1.bf16.msra.mxu0 %v1230
    %1240 = vmatprep.subr.bf16.mxu0 0
    %1241 = vmatpush1.bf16.msra.mxu0 0
    %1242 = vmatprep.subr.bf16.mxu0 0
    %1243 = vmatpush1.bf16.msra.mxu0 0
    %1244 = vmatprep.subr.bf16.mxu0 0
    %1245 = vmatpush1.bf16.msra.mxu0 0
    %1246 = vmatprep.subr.bf16.mxu0 0
    %1247 = vmatpush1.bf16.msra.mxu0 0
    %1248 = vmatprep.subr.bf16.mxu0 0
    %1249 = vmatpush1.bf16.msra.mxu0 0
    %1250 = vmatprep.subr.bf16.mxu0 0
    %1251 = vmatpush1.bf16.msra.mxu0 0
    %1252 = vmatprep.subr.bf16.mxu0 0
    %1253 = vmatpush1.bf16.msra.mxu0 0
    %1254 = vmatprep.subr.bf16.mxu0 0
    %1255 = vmatpush1.bf16.msra.mxu0 0
    %1256 = vmatprep.subr.bf16.mxu0 0
    %1257 = vmatpush1.bf16.msra.mxu0 0
    %1258 = vmatprep.subr.bf16.mxu0 0
    %1259 = vmatpush1.bf16.msra.mxu0 0
    %1260 = vmatprep.subr.bf16.mxu0 0
    %1261 = vmatpush1.bf16.msra.mxu0 0
    %1262 = vmatprep.subr.bf16.mxu0 0
    %1263 = vmatpush1.bf16.msra.mxu0 0
    %1264 = vmatprep.subr.bf16.mxu0 0
    %1265 = vmatpush1.bf16.msra.mxu0 0
    %1266 = vmatprep.subr.bf16.mxu0 0
    %1267 = vmatpush1.bf16.msra.mxu0 0
    %1268 = vmatprep.mubr.bf16.mxu0 0
    %1269 = vmatmul.mubr.bf16.gmra.mrb[0].mxu0 %v1234
    %v1270 = vpop.f32.mrb[0].mxu0
    %v1271 = vadd.f32 %v1220, %v1270
    %v1272 = vpop.f32.mrb[0].mxu0
    %v1273 = vpop.f32.mrb[0].mxu0
    %v1274 = vadd.f32 %v1220, %v1273
    %v1275 = vpop.f32.mrb[0].mxu0
    %1276 = vdwg.mxu0
    %v1277 = vmax.f32 %v1271, 0.0
    %v1278 = vmax.f32 %v1274, 0.0
    %v1279 = vpack.c.bf16 %v1278, %v1277
    %v1280 = vlaneseq
    %v1281 = vshrl.u32 %v1280, 7
    %v1282 = vsub.s32 5, %v1281
    %v1283 = vrot.slane %v58, %v1282
    %v1288 = vunpack.c.l.b16 %v1212
    %v1289 = vunpack.c.l.b16 %v1213
    %v1290 = vunpack.c.l.b16 %v1214
    %v1291 = vunpack.c.l.b16 %v1215
    %v1292 = vpack.c.b16 %v1289, %v1288
    %v1293 = vpack.c.b16 %v1291, %v1290
    %v1297 = vsel %vm92, %v1279, 0
    %1299 = vmatprep.subr.bf16.mxu0 0
    %1300 = vmatpush1.bf16.msra.mxu0 %v1292
    %1301 = vmatprep.subr.bf16.mxu0 0
    %1302 = vmatpush1.bf16.msra.mxu0 %v1293
    %1303 = vmatprep.subr.bf16.mxu0 0
    %1304 = vmatpush1.bf16.msra.mxu0 0
    %1305 = vmatprep.subr.bf16.mxu0 0
    %1306 = vmatpush1.bf16.msra.mxu0 0
    %1307 = vmatprep.subr.bf16.mxu0 0
    %1308 = vmatpush1.bf16.msra.mxu0 0
    %1309 = vmatprep.subr.bf16.mxu0 0
    %1310 = vmatpush1.bf16.msra.mxu0 0
    %1311 = vmatprep.subr.bf16.mxu0 0
    %1312 = vmatpush1.bf16.msra.mxu0 0
    %1313 = vmatprep.subr.bf16.mxu0 0
    %1314 = vmatpush1.bf16.msra.mxu0 0
    %1315 = vmatprep.subr.bf16.mxu0 0
    %1316 = vmatpush1.bf16.msra.mxu0 0
    %1317 = vmatprep.subr.bf16.mxu0 0
    %1318 = vmatpush1.bf16.msra.mxu0 0
    %1319 = vmatprep.subr.bf16.mxu0 0
    %1320 = vmatpush1.bf16.msra.mxu0 0
    %1321 = vmatprep.subr.bf16.mxu0 0
    %1322 = vmatpush1.bf16.msra.mxu0 0
    %1323 = vmatprep.subr.bf16.mxu0 0
    %1324 = vmatpush1.bf16.msra.mxu0 0
    %1325 = vmatprep.subr.bf16.mxu0 0
    %1326 = vmatpush1.bf16.msra.mxu0 0
    %1327 = vmatprep.subr.bf16.mxu0 0
    %1328 = vmatpush1.bf16.msra.mxu0 0
    %1329 = vmatprep.subr.bf16.mxu0 0
    %1330 = vmatpush1.bf16.msra.mxu0 0
    %1331 = vmatprep.mubr.bf16.mxu0 0
    %1332 = vmatmul.mubr.bf16.gmra.mrb[0].mxu0 %v1297
    %v1333 = vpop.f32.mrb[0].mxu0
    %v1334 = vadd.f32 %v1283, %v1333
    %v1335 = vpop.f32.mrb[0].mxu0
    %v1336 = vpop.f32.mrb[0].mxu0
    %v1337 = vadd.f32 %v1283, %v1336
    %v1338 = vpop.f32.mrb[0].mxu0
    %1339 = vdwg.mxu0
    %v1340 = vadd.f32 %v1206, %v1334
    %v1341 = vadd.f32 %v1207, %v1337
    %v1342 = vsel %vm92, %v1340, 0.0
    %1343 = vadd.xlane.f32.xlu0 %v1342
    %v1344 = vpop.xlane.xlu0 %1343
    %v1345 = vsel %vm92, %v1341, 0.0
    %1346 = vadd.xlane.f32.xlu0 %v1345
    %v1347 = vpop.xlane.xlu0 %1346
    %v1348 = vmul.f32 %v1344, %v1175
    %v1349 = vmul.f32 %v1347, %v1175
    %v1350 = vsub.f32 %v1340, %v1348
    %v1351 = vsub.f32 %v1341, %v1349
    %v1352 = vmul.f32 %v1350, %v1350
    %v1353 = vmul.f32 %v1351, %v1351
    %v1354 = vsel %vm92, %v1352, 0.0
    %1355 = vadd.xlane.f32.xlu0 %v1354
    %v1356 = vpop.xlane.xlu0 %1355
    %v1357 = vsel %vm92, %v1353, 0.0
    %1358 = vadd.xlane.f32.xlu0 %v1357
    %v1359 = vpop.xlane.xlu0 %1358
    %v1360 = vmul.f32 %v1356, %v1175
    %v1361 = vmul.f32 %v1359, %v1175
    %v1362 = vadd.f32 %v1360, 1e-05
    %v1363 = vadd.f32 %v1361, 1e-05
    %v1364 = vrsqrt.pop %v1362
    %v1365 = vrsqrt.pop %v1363
    %v1366 = vmul.f32 %v1350, %v1364
    %v1367 = vmul.f32 %v1351, %v1365
    %v1368 = vlaneseq
    %v1369 = vshrl.u32 %v1368, 7
    %v1370 = vsub.s32 6, %v1369
    %v1371 = vrot.slane %v58, %v1370
    %v1372 = vmul.f32 %v1366, %v1371
    %v1373 = vmul.f32 %v1367, %v1371
    %v1374 = vlaneseq
    %v1375 = vshrl.u32 %v1374, 7
    %v1376 = vsub.s32 7, %v1375
    %v1377 = vrot.slane %v58, %v1376
    %v1378 = vadd.f32 %v1372, %v1377
    %v1379 = vadd.f32 %v1373, %v1377
    %1380 = vst.msk [vmem:[#allocation8] sm:$0xff] %vm92, %v1378
    %1381 = vst.msk [vmem:[#allocation8 + $0x8] sm:$0xff] %vm92, %v1379
    // Predicated region
    $region26: #{tpu_custom_call.1} parent=1 // pred_check
      _
    $region27: #{tpu_custom_call.1} parent=1 // pred_check_branch
      %1383 = sbr.rel (0) target = $region29
    $region28: #{tpu_custom_call.1} parent=1 // pred_region
      %s1385 = ssub.s32 256, 256
      %1386 = vsyncadd [#allocation4], %s1385
      %s1387 = sshll.u32 [#allocation8], 4
      %s1388 = int_to_ptr.vmem [resolvable:$true] %s1387
      %1393 = dma.vmem_to_hbm [thread:$0]  %s1388, 256, %s3, [#allocation4], 128, 128, 8
    $region29: #{tpu_custom_call.1} parent=1 // pred_fallthru
      _
    // Predicated region
    $region30: #{tpu_custom_call.1} parent=1 // pred_check
      _
    $region31: #{tpu_custom_call.1} parent=1 // pred_check_branch
      %1395 = sbr.rel (0) target = $region33
    $region32: #{tpu_custom_call.1} parent=1 // pred_region
      %1396 = dma.done [#allocation4], 256
    $region33: #{tpu_custom_call.1} parent=1 // pred_fallthru
      _
    %1397 = vsyncpa [#allocation3], 1
    %1398 = vsyncpa [#allocation6], 1
    %1399 = vsyncpa [#allocation4], 1

</llo_original>
